<compile_context>
chip_gen: v7x
topology: tpu7x:2x2x1
jax: 0.10.0
libtpu: 0.0.40
codegen_flags: <defaults>
</compile_context>

<pallas_src>
import jax
import jax.numpy as jnp
from jax.experimental import pallas as pl
from jax.experimental.pallas import tpu as pltpu


# ---------------------------------------------------------------------------
# Kernel
# ---------------------------------------------------------------------------

def _affine_relu_cf(x, w, b):
    """relu(w @ x + b) on the VPU, channels-first.

    x: (Cin, TM)  lane-dense activations
    w: (Cout, Cin) folded conv+BN weight
    b: (Cout, 1)   folded conv+BN bias
    returns (Cout, TM)
    """
    cout, cin = w.shape
    tm = x.shape[1]
    acc = jnp.broadcast_to(b, (cout, tm))            # bias = accumulator init
    # Unrolled broadcast-FMA: (Cout,1) * (1,TM) -> (Cout,TM).  K is 3/6/12 so
    # this is 21 tiny multiply-adds total -- pure VPU work, no MXU.
    for k in range(cin):
        acc = acc + w[:, k:k + 1] * x[k:k + 1, :]
    return jnp.maximum(acc, 0.0)


def _point_mlp_kernel(x_ref, w1_ref, b1_ref, w2_ref, b2_ref, w3_ref, b3_ref,
                      o_ref):
    x = x_ref[...]                                   # (3, TM), lanes = points

    h = _affine_relu_cf(x, w1_ref[...], b1_ref[...])   # (6,  TM)
    h = _affine_relu_cf(h, w2_ref[...], b2_ref[...])   # (12, TM)
    h = _affine_relu_cf(h, w3_ref[...], b3_ref[...])   # (24, TM)

    # concat(xyz, features) along the channel (sublane) dim; lane-dense stores.
    o_ref[0:3, :] = x
    o_ref[3:27, :] = h
    # Optional (changes precision): emit the 24 feature channels as bf16 via a
    # split output to cut HBM writeback ~1.7x on a mem-bound kernel.


# ---------------------------------------------------------------------------
# Parameter handling (eval-mode BN folding, PyTorch Conv1d weight layout)
# ---------------------------------------------------------------------------

def _fold_bn(w, b, gamma, beta, mean, var, eps=1e-5):
    """Fold eval-mode BatchNorm1d into a pointwise conv.  w: (Cout, Cin)."""
    scale = gamma / jnp.sqrt(var + eps)              # (Cout,)
    w_eff = w * scale[:, None]
    b_eff = scale * (b - mean) + beta
    return w_eff, b_eff


def init_params(key):
    """Deterministic synthetic parameters matching the PyTorch module shapes."""
    ks = jax.random.split(key, 3)
    params = {}
    dims = [(3, 6), (6, 12), (12, 24)]
    for i, (cin, cout) in enumerate(dims):
        kw, kb, kg, kbe, km, kv = jax.random.split(ks[i], 6)
        # Conv1d weight (Cout, Cin, 1) -> stored as (Cout, Cin).
        w = jax.random.normal(kw, (cout, cin), jnp.float32) * 0.5
        b = jax.random.normal(kb, (cout,), jnp.float32) * 0.1
        gamma = 1.0 + 0.1 * jax.random.normal(kg, (cout,), jnp.float32)
        beta = 0.1 * jax.random.normal(kbe, (cout,), jnp.float32)
        mean = 0.1 * jax.random.normal(km, (cout,), jnp.float32)
        var = jnp.abs(jax.random.normal(kv, (cout,), jnp.float32)) + 0.5
        params[f"layer{i + 1}"] = dict(w=w, b=b, gamma=gamma, beta=beta,
                                       mean=mean, var=var)
    return params


def _folded_params(params):
    folded = []
    for i in range(3):
        p = params[f"layer{i + 1}"]
        w_eff, b_eff = _fold_bn(p["w"], p["b"], p["gamma"], p["beta"],
                                p["mean"], p["var"])
        folded.append((w_eff, b_eff.reshape(-1, 1)))
    return folded


# ---------------------------------------------------------------------------
# Wrappers
# ---------------------------------------------------------------------------

def _round_up(x, m):
    return ((x + m - 1) // m) * m


def base_point_parsing_net_ncl(x_cf, params, *, tile_m=8192):
    """Channels-first entry point.  x_cf: (3, M) -> (27, M)."""
    C, M = x_cf.shape
    assert C == 3

    # Tile size: large, lane-aligned, clamped to the (rounded) problem size.
    tm = min(_round_up(max(tile_m, 128), 128), _round_up(M, 128))
    m_pad = _round_up(M, tm)
    if m_pad != M:
        # Ragged tail: pad with zeros, slice the result back.  Padded columns
        # produce finite garbage that is discarded.
        x_cf = jnp.pad(x_cf, ((0, 0), (0, m_pad - M)))

    (w1, b1), (w2, b2), (w3, b3) = _folded_params(params)

    grid = (m_pad // tm,)
    # Constant index maps -> Pallas fetches these tiny blocks once, not per step.
    full_spec = lambda shape: pl.BlockSpec(shape, lambda i: (0, 0))

    out_cf = pl.pallas_call(
        _point_mlp_kernel,
        out_shape=jax.ShapeDtypeStruct((27, m_pad), jnp.float32),
        grid_spec=pltpu.PrefetchScalarGridSpec(
            num_scalar_prefetch=0,
            grid=grid,
            in_specs=[
                pl.BlockSpec((3, tm), lambda i: (0, i)),    # points tile (lanes)
                full_spec((6, 3)),   full_spec((6, 1)),     # layer 1 (folded BN)
                full_spec((12, 6)),  full_spec((12, 1)),    # layer 2
                full_spec((24, 12)), full_spec((24, 1)),    # layer 3
            ],
            out_specs=pl.BlockSpec((27, tm), lambda i: (0, i)),
        ),
        compiler_params=pltpu.CompilerParams(
            dimension_semantics=("parallel",)),
    )(x_cf, w1, b1, w2, b2, w3, b3)

    if m_pad != M:
        out_cf = out_cf[:, :M]
    return out_cf


def base_point_parsing_net(in_mat, params, *, tile_m=8192):
    """Module-contract entry point.  in_mat: (B, N, 3) -> (B, N, 27).

    The NLC<->NCL transposes here mirror the .transpose(1, 2) calls inside the
    PyTorch forward; callers already holding channels-first data should use
    base_point_parsing_net_ncl directly and skip them (layout plumbing only).
    """
    B, N, C = in_mat.shape
    assert C == 3
    M = B * N
    x_cf = jnp.transpose(in_mat.reshape(M, 3))        # (3, M) channels-first
    out_cf = base_point_parsing_net_ncl(x_cf, params, tile_m=tile_m)
    return jnp.transpose(out_cf).reshape(B, N, 27)


# ---------------------------------------------------------------------------
# Pure-JAX reference (eval-mode BN)
# ---------------------------------------------------------------------------

def _reference(in_mat, params):
    x = in_mat
    for i in range(3):
        p = params[f"layer{i + 1}"]
        w_eff, b_eff = _fold_bn(p["w"], p["b"], p["gamma"], p["beta"],
                                p["mean"], p["var"])
        x = jnp.maximum(x @ w_eff.T + b_eff, 0.0)
    return jnp.concatenate([in_mat[..., :3], x], axis=-1)


if __name__ == "__main__":
    key = jax.random.PRNGKey(0)
    k_in, k_par = jax.random.split(key)

    B, N = 2, 500                       # M = 1000: exercises ragged-tail padding
    in_mat = jax.random.normal(k_in, (B, N, 3), jnp.float32)
    params = init_params(k_par)
    ref = _reference(in_mat, params)

    # Default (large) tile and a small tile that forces a multi-step grid.
    for tile_m in (8192, 256):
        out = base_point_parsing_net(in_mat, params, tile_m=tile_m)
        out = jax.block_until_ready(out)
        assert out.shape == (B, N, 27), out.shape
        assert jnp.allclose(out, ref, atol=1e-4, rtol=1e-4), \
            (tile_m, float(jnp.max(jnp.abs(out - ref))))

    print("KERNEL_OK")
</pallas_src>

<mosaic_0001>
module attributes {stable_mosaic.version = 11 : i64} {
  func.func @_point_mlp_kernel(%arg0: i32, %arg1: memref<3x1024xf32, #tpu.memory_space<vmem>>, %arg2: memref<6x3xf32, #tpu.memory_space<vmem>>, %arg3: memref<6x1xf32, #tpu.memory_space<vmem>>, %arg4: memref<12x6xf32, #tpu.memory_space<vmem>>, %arg5: memref<12x1xf32, #tpu.memory_space<vmem>>, %arg6: memref<24x12xf32, #tpu.memory_space<vmem>>, %arg7: memref<24x1xf32, #tpu.memory_space<vmem>>, %arg8: memref<27x1024xf32, #tpu.memory_space<vmem>>) attributes {dimension_semantics = [#tpu.dimension_semantics<parallel>], iteration_bounds = array<i64: 1>, scalar_prefetch = 0 : i64, scratch_operands = 0 : i64, tpu.core_type = #tpu.core_type<tc>, window_params = [{transform_indices = @transform_0, window_bounds = array<i64: 3, 1024>}, {pipeline_mode = #tpu.pipeline_mode<synchronous>, transform_indices = @transform_1, window_bounds = array<i64: 6, 3>}, {pipeline_mode = #tpu.pipeline_mode<synchronous>, transform_indices = @transform_2, window_bounds = array<i64: 6, 1>}, {pipeline_mode = #tpu.pipeline_mode<synchronous>, transform_indices = @transform_3, window_bounds = array<i64: 12, 6>}, {pipeline_mode = #tpu.pipeline_mode<synchronous>, transform_indices = @transform_4, window_bounds = array<i64: 12, 1>}, {pipeline_mode = #tpu.pipeline_mode<synchronous>, transform_indices = @transform_5, window_bounds = array<i64: 24, 12>}, {pipeline_mode = #tpu.pipeline_mode<synchronous>, transform_indices = @transform_6, window_bounds = array<i64: 24, 1>}, {transform_indices = @transform_7, window_bounds = array<i64: 27, 1024>}]} {
    %c0 = arith.constant 0 : index
    %c0_0 = arith.constant 0 : index
    %0 = vector.load %arg1[%c0, %c0_0] : memref<3x1024xf32, #tpu.memory_space<vmem>>, vector<3x1024xf32>
    %c0_1 = arith.constant 0 : index
    %c0_2 = arith.constant 0 : index
    %1 = vector.load %arg2[%c0_1, %c0_2] : memref<6x3xf32, #tpu.memory_space<vmem>>, vector<6x3xf32>
    %c0_3 = arith.constant 0 : index
    %c0_4 = arith.constant 0 : index
    %2 = vector.load %arg3[%c0_3, %c0_4] : memref<6x1xf32, #tpu.memory_space<vmem>>, vector<6x1xf32>
    %3 = vector.shape_cast %2 : vector<6x1xf32> to vector<6x1xf32>
    %4 = vector.broadcast %3 : vector<6x1xf32> to vector<6x1024xf32>
    %5 = vector.extract_strided_slice %1 {offsets = [0, 0], sizes = [6, 1], strides = [1, 1]} : vector<6x3xf32> to vector<6x1xf32>
    %6 = vector.extract_strided_slice %0 {offsets = [0, 0], sizes = [1, 1024], strides = [1, 1]} : vector<3x1024xf32> to vector<1x1024xf32>
    %7 = vector.broadcast %5 : vector<6x1xf32> to vector<6x1024xf32>
    %8 = vector.broadcast %6 : vector<1x1024xf32> to vector<6x1024xf32>
    %9 = arith.mulf %7, %8 : vector<6x1024xf32>
    %10 = arith.addf %4, %9 : vector<6x1024xf32>
    %11 = vector.extract_strided_slice %1 {offsets = [0, 1], sizes = [6, 1], strides = [1, 1]} : vector<6x3xf32> to vector<6x1xf32>
    %12 = vector.extract_strided_slice %0 {offsets = [1, 0], sizes = [1, 1024], strides = [1, 1]} : vector<3x1024xf32> to vector<1x1024xf32>
    %13 = vector.broadcast %11 : vector<6x1xf32> to vector<6x1024xf32>
    %14 = vector.broadcast %12 : vector<1x1024xf32> to vector<6x1024xf32>
    %15 = arith.mulf %13, %14 : vector<6x1024xf32>
    %16 = arith.addf %10, %15 : vector<6x1024xf32>
    %17 = vector.extract_strided_slice %1 {offsets = [0, 2], sizes = [6, 1], strides = [1, 1]} : vector<6x3xf32> to vector<6x1xf32>
    %18 = vector.extract_strided_slice %0 {offsets = [2, 0], sizes = [1, 1024], strides = [1, 1]} : vector<3x1024xf32> to vector<1x1024xf32>
    %19 = vector.broadcast %17 : vector<6x1xf32> to vector<6x1024xf32>
    %20 = vector.broadcast %18 : vector<1x1024xf32> to vector<6x1024xf32>
    %21 = arith.mulf %19, %20 : vector<6x1024xf32>
    %22 = arith.addf %16, %21 : vector<6x1024xf32>
    %cst = arith.constant 0.000000e+00 : f32
    %23 = vector.broadcast %cst : f32 to vector<6x1024xf32>
    %24 = arith.maximumf %22, %23 : vector<6x1024xf32>
    %c0_5 = arith.constant 0 : index
    %c0_6 = arith.constant 0 : index
    %25 = vector.load %arg4[%c0_5, %c0_6] : memref<12x6xf32, #tpu.memory_space<vmem>>, vector<12x6xf32>
    %c0_7 = arith.constant 0 : index
    %c0_8 = arith.constant 0 : index
    %26 = vector.load %arg5[%c0_7, %c0_8] : memref<12x1xf32, #tpu.memory_space<vmem>>, vector<12x1xf32>
    %27 = vector.shape_cast %26 : vector<12x1xf32> to vector<12x1xf32>
    %28 = vector.broadcast %27 : vector<12x1xf32> to vector<12x1024xf32>
    %29 = vector.extract_strided_slice %25 {offsets = [0, 0], sizes = [12, 1], strides = [1, 1]} : vector<12x6xf32> to vector<12x1xf32>
    %30 = vector.extract_strided_slice %24 {offsets = [0, 0], sizes = [1, 1024], strides = [1, 1]} : vector<6x1024xf32> to vector<1x1024xf32>
    %31 = vector.broadcast %29 : vector<12x1xf32> to vector<12x1024xf32>
    %32 = vector.broadcast %30 : vector<1x1024xf32> to vector<12x1024xf32>
    %33 = arith.mulf %31, %32 : vector<12x1024xf32>
    %34 = arith.addf %28, %33 : vector<12x1024xf32>
    %35 = vector.extract_strided_slice %25 {offsets = [0, 1], sizes = [12, 1], strides = [1, 1]} : vector<12x6xf32> to vector<12x1xf32>
    %36 = vector.extract_strided_slice %24 {offsets = [1, 0], sizes = [1, 1024], strides = [1, 1]} : vector<6x1024xf32> to vector<1x1024xf32>
    %37 = vector.broadcast %35 : vector<12x1xf32> to vector<12x1024xf32>
    %38 = vector.broadcast %36 : vector<1x1024xf32> to vector<12x1024xf32>
    %39 = arith.mulf %37, %38 : vector<12x1024xf32>
    %40 = arith.addf %34, %39 : vector<12x1024xf32>
    %41 = vector.extract_strided_slice %25 {offsets = [0, 2], sizes = [12, 1], strides = [1, 1]} : vector<12x6xf32> to vector<12x1xf32>
    %42 = vector.extract_strided_slice %24 {offsets = [2, 0], sizes = [1, 1024], strides = [1, 1]} : vector<6x1024xf32> to vector<1x1024xf32>
    %43 = vector.broadcast %41 : vector<12x1xf32> to vector<12x1024xf32>
    %44 = vector.broadcast %42 : vector<1x1024xf32> to vector<12x1024xf32>
    %45 = arith.mulf %43, %44 : vector<12x1024xf32>
    %46 = arith.addf %40, %45 : vector<12x1024xf32>
    %47 = vector.extract_strided_slice %25 {offsets = [0, 3], sizes = [12, 1], strides = [1, 1]} : vector<12x6xf32> to vector<12x1xf32>
    %48 = vector.extract_strided_slice %24 {offsets = [3, 0], sizes = [1, 1024], strides = [1, 1]} : vector<6x1024xf32> to vector<1x1024xf32>
    %49 = vector.broadcast %47 : vector<12x1xf32> to vector<12x1024xf32>
    %50 = vector.broadcast %48 : vector<1x1024xf32> to vector<12x1024xf32>
    %51 = arith.mulf %49, %50 : vector<12x1024xf32>
    %52 = arith.addf %46, %51 : vector<12x1024xf32>
    %53 = vector.extract_strided_slice %25 {offsets = [0, 4], sizes = [12, 1], strides = [1, 1]} : vector<12x6xf32> to vector<12x1xf32>
    %54 = vector.extract_strided_slice %24 {offsets = [4, 0], sizes = [1, 1024], strides = [1, 1]} : vector<6x1024xf32> to vector<1x1024xf32>
    %55 = vector.broadcast %53 : vector<12x1xf32> to vector<12x1024xf32>
    %56 = vector.broadcast %54 : vector<1x1024xf32> to vector<12x1024xf32>
    %57 = arith.mulf %55, %56 : vector<12x1024xf32>
    %58 = arith.addf %52, %57 : vector<12x1024xf32>
    %59 = vector.extract_strided_slice %25 {offsets = [0, 5], sizes = [12, 1], strides = [1, 1]} : vector<12x6xf32> to vector<12x1xf32>
    %60 = vector.extract_strided_slice %24 {offsets = [5, 0], sizes = [1, 1024], strides = [1, 1]} : vector<6x1024xf32> to vector<1x1024xf32>
    %61 = vector.broadcast %59 : vector<12x1xf32> to vector<12x1024xf32>
    %62 = vector.broadcast %60 : vector<1x1024xf32> to vector<12x1024xf32>
    %63 = arith.mulf %61, %62 : vector<12x1024xf32>
    %64 = arith.addf %58, %63 : vector<12x1024xf32>
    %cst_9 = arith.constant 0.000000e+00 : f32
    %65 = vector.broadcast %cst_9 : f32 to vector<12x1024xf32>
    %66 = arith.maximumf %64, %65 : vector<12x1024xf32>
    %c0_10 = arith.constant 0 : index
    %c0_11 = arith.constant 0 : index
    %67 = vector.load %arg6[%c0_10, %c0_11] : memref<24x12xf32, #tpu.memory_space<vmem>>, vector<24x12xf32>
    %c0_12 = arith.constant 0 : index
    %c0_13 = arith.constant 0 : index
    %68 = vector.load %arg7[%c0_12, %c0_13] : memref<24x1xf32, #tpu.memory_space<vmem>>, vector<24x1xf32>
    %69 = vector.shape_cast %68 : vector<24x1xf32> to vector<24x1xf32>
    %70 = vector.broadcast %69 : vector<24x1xf32> to vector<24x1024xf32>
    %71 = vector.extract_strided_slice %67 {offsets = [0, 0], sizes = [24, 1], strides = [1, 1]} : vector<24x12xf32> to vector<24x1xf32>
    %72 = vector.extract_strided_slice %66 {offsets = [0, 0], sizes = [1, 1024], strides = [1, 1]} : vector<12x1024xf32> to vector<1x1024xf32>
    %73 = vector.broadcast %71 : vector<24x1xf32> to vector<24x1024xf32>
    %74 = vector.broadcast %72 : vector<1x1024xf32> to vector<24x1024xf32>
    %75 = arith.mulf %73, %74 : vector<24x1024xf32>
    %76 = arith.addf %70, %75 : vector<24x1024xf32>
    %77 = vector.extract_strided_slice %67 {offsets = [0, 1], sizes = [24, 1], strides = [1, 1]} : vector<24x12xf32> to vector<24x1xf32>
    %78 = vector.extract_strided_slice %66 {offsets = [1, 0], sizes = [1, 1024], strides = [1, 1]} : vector<12x1024xf32> to vector<1x1024xf32>
    %79 = vector.broadcast %77 : vector<24x1xf32> to vector<24x1024xf32>
    %80 = vector.broadcast %78 : vector<1x1024xf32> to vector<24x1024xf32>
    %81 = arith.mulf %79, %80 : vector<24x1024xf32>
    %82 = arith.addf %76, %81 : vector<24x1024xf32>
    %83 = vector.extract_strided_slice %67 {offsets = [0, 2], sizes = [24, 1], strides = [1, 1]} : vector<24x12xf32> to vector<24x1xf32>
    %84 = vector.extract_strided_slice %66 {offsets = [2, 0], sizes = [1, 1024], strides = [1, 1]} : vector<12x1024xf32> to vector<1x1024xf32>
    %85 = vector.broadcast %83 : vector<24x1xf32> to vector<24x1024xf32>
    %86 = vector.broadcast %84 : vector<1x1024xf32> to vector<24x1024xf32>
    %87 = arith.mulf %85, %86 : vector<24x1024xf32>
    %88 = arith.addf %82, %87 : vector<24x1024xf32>
    %89 = vector.extract_strided_slice %67 {offsets = [0, 3], sizes = [24, 1], strides = [1, 1]} : vector<24x12xf32> to vector<24x1xf32>
    %90 = vector.extract_strided_slice %66 {offsets = [3, 0], sizes = [1, 1024], strides = [1, 1]} : vector<12x1024xf32> to vector<1x1024xf32>
    %91 = vector.broadcast %89 : vector<24x1xf32> to vector<24x1024xf32>
    %92 = vector.broadcast %90 : vector<1x1024xf32> to vector<24x1024xf32>
    %93 = arith.mulf %91, %92 : vector<24x1024xf32>
    %94 = arith.addf %88, %93 : vector<24x1024xf32>
    %95 = vector.extract_strided_slice %67 {offsets = [0, 4], sizes = [24, 1], strides = [1, 1]} : vector<24x12xf32> to vector<24x1xf32>
    %96 = vector.extract_strided_slice %66 {offsets = [4, 0], sizes = [1, 1024], strides = [1, 1]} : vector<12x1024xf32> to vector<1x1024xf32>
    %97 = vector.broadcast %95 : vector<24x1xf32> to vector<24x1024xf32>
    %98 = vector.broadcast %96 : vector<1x1024xf32> to vector<24x1024xf32>
    %99 = arith.mulf %97, %98 : vector<24x1024xf32>
    %100 = arith.addf %94, %99 : vector<24x1024xf32>
    %101 = vector.extract_strided_slice %67 {offsets = [0, 5], sizes = [24, 1], strides = [1, 1]} : vector<24x12xf32> to vector<24x1xf32>
    %102 = vector.extract_strided_slice %66 {offsets = [5, 0], sizes = [1, 1024], strides = [1, 1]} : vector<12x1024xf32> to vector<1x1024xf32>
    %103 = vector.broadcast %101 : vector<24x1xf32> to vector<24x1024xf32>
    %104 = vector.broadcast %102 : vector<1x1024xf32> to vector<24x1024xf32>
    %105 = arith.mulf %103, %104 : vector<24x1024xf32>
    %106 = arith.addf %100, %105 : vector<24x1024xf32>
    %107 = vector.extract_strided_slice %67 {offsets = [0, 6], sizes = [24, 1], strides = [1, 1]} : vector<24x12xf32> to vector<24x1xf32>
    %108 = vector.extract_strided_slice %66 {offsets = [6, 0], sizes = [1, 1024], strides = [1, 1]} : vector<12x1024xf32> to vector<1x1024xf32>
    %109 = vector.broadcast %107 : vector<24x1xf32> to vector<24x1024xf32>
    %110 = vector.broadcast %108 : vector<1x1024xf32> to vector<24x1024xf32>
    %111 = arith.mulf %109, %110 : vector<24x1024xf32>
    %112 = arith.addf %106, %111 : vector<24x1024xf32>
    %113 = vector.extract_strided_slice %67 {offsets = [0, 7], sizes = [24, 1], strides = [1, 1]} : vector<24x12xf32> to vector<24x1xf32>
    %114 = vector.extract_strided_slice %66 {offsets = [7, 0], sizes = [1, 1024], strides = [1, 1]} : vector<12x1024xf32> to vector<1x1024xf32>
    %115 = vector.broadcast %113 : vector<24x1xf32> to vector<24x1024xf32>
    %116 = vector.broadcast %114 : vector<1x1024xf32> to vector<24x1024xf32>
    %117 = arith.mulf %115, %116 : vector<24x1024xf32>
    %118 = arith.addf %112, %117 : vector<24x1024xf32>
    %119 = vector.extract_strided_slice %67 {offsets = [0, 8], sizes = [24, 1], strides = [1, 1]} : vector<24x12xf32> to vector<24x1xf32>
    %120 = vector.extract_strided_slice %66 {offsets = [8, 0], sizes = [1, 1024], strides = [1, 1]} : vector<12x1024xf32> to vector<1x1024xf32>
    %121 = vector.broadcast %119 : vector<24x1xf32> to vector<24x1024xf32>
    %122 = vector.broadcast %120 : vector<1x1024xf32> to vector<24x1024xf32>
    %123 = arith.mulf %121, %122 : vector<24x1024xf32>
    %124 = arith.addf %118, %123 : vector<24x1024xf32>
    %125 = vector.extract_strided_slice %67 {offsets = [0, 9], sizes = [24, 1], strides = [1, 1]} : vector<24x12xf32> to vector<24x1xf32>
    %126 = vector.extract_strided_slice %66 {offsets = [9, 0], sizes = [1, 1024], strides = [1, 1]} : vector<12x1024xf32> to vector<1x1024xf32>
    %127 = vector.broadcast %125 : vector<24x1xf32> to vector<24x1024xf32>
    %128 = vector.broadcast %126 : vector<1x1024xf32> to vector<24x1024xf32>
    %129 = arith.mulf %127, %128 : vector<24x1024xf32>
    %130 = arith.addf %124, %129 : vector<24x1024xf32>
    %131 = vector.extract_strided_slice %67 {offsets = [0, 10], sizes = [24, 1], strides = [1, 1]} : vector<24x12xf32> to vector<24x1xf32>
    %132 = vector.extract_strided_slice %66 {offsets = [10, 0], sizes = [1, 1024], strides = [1, 1]} : vector<12x1024xf32> to vector<1x1024xf32>
    %133 = vector.broadcast %131 : vector<24x1xf32> to vector<24x1024xf32>
    %134 = vector.broadcast %132 : vector<1x1024xf32> to vector<24x1024xf32>
    %135 = arith.mulf %133, %134 : vector<24x1024xf32>
    %136 = arith.addf %130, %135 : vector<24x1024xf32>
    %137 = vector.extract_strided_slice %67 {offsets = [0, 11], sizes = [24, 1], strides = [1, 1]} : vector<24x12xf32> to vector<24x1xf32>
    %138 = vector.extract_strided_slice %66 {offsets = [11, 0], sizes = [1, 1024], strides = [1, 1]} : vector<12x1024xf32> to vector<1x1024xf32>
    %139 = vector.broadcast %137 : vector<24x1xf32> to vector<24x1024xf32>
    %140 = vector.broadcast %138 : vector<1x1024xf32> to vector<24x1024xf32>
    %141 = arith.mulf %139, %140 : vector<24x1024xf32>
    %142 = arith.addf %136, %141 : vector<24x1024xf32>
    %cst_14 = arith.constant 0.000000e+00 : f32
    %143 = vector.broadcast %cst_14 : f32 to vector<24x1024xf32>
    %144 = arith.maximumf %142, %143 : vector<24x1024xf32>
    %c0_15 = arith.constant 0 : index
    %c0_16 = arith.constant 0 : index
    %145 = vector.load %arg8[%c0_15, %c0_16] : memref<27x1024xf32, #tpu.memory_space<vmem>>, vector<3x1024xf32>
    tpu.vector_store %arg8[%c0_15, %c0_16], %0 {strides = array<i32>} : memref<27x1024xf32, #tpu.memory_space<vmem>>, vector<3x1024xf32>,
    %c3 = arith.constant 3 : index
    %c0_17 = arith.constant 0 : index
    %146 = vector.load %arg8[%c3, %c0_17] : memref<27x1024xf32, #tpu.memory_space<vmem>>, vector<24x1024xf32>
    tpu.vector_store %arg8[%c3, %c0_17], %144 {strides = array<i32>} : memref<27x1024xf32, #tpu.memory_space<vmem>>, vector<24x1024xf32>,
    return
  }
  func.func @transform_0(%arg0: i32) -> (i32, i32) {
    %c0_i32 = arith.constant 0 : i32
    %c0_i32_0 = arith.constant 0 : i32
    return %c0_i32, %arg0 : i32, i32
  }
  func.func @transform_1(%arg0: i32) -> (i32, i32) {
    %c0_i32 = arith.constant 0 : i32
    %c0_i32_0 = arith.constant 0 : i32
    %c0_i32_1 = arith.constant 0 : i32
    return %c0_i32, %c0_i32_0 : i32, i32
  }
  func.func @transform_2(%arg0: i32) -> (i32, i32) {
    %c0_i32 = arith.constant 0 : i32
    %c0_i32_0 = arith.constant 0 : i32
    %c0_i32_1 = arith.constant 0 : i32
    return %c0_i32, %c0_i32_0 : i32, i32
  }
  func.func @transform_3(%arg0: i32) -> (i32, i32) {
    %c0_i32 = arith.constant 0 : i32
    %c0_i32_0 = arith.constant 0 : i32
    %c0_i32_1 = arith.constant 0 : i32
    return %c0_i32, %c0_i32_0 : i32, i32
  }
  func.func @transform_4(%arg0: i32) -> (i32, i32) {
    %c0_i32 = arith.constant 0 : i32
    %c0_i32_0 = arith.constant 0 : i32
    %c0_i32_1 = arith.constant 0 : i32
    return %c0_i32, %c0_i32_0 : i32, i32
  }
  func.func @transform_5(%arg0: i32) -> (i32, i32) {
    %c0_i32 = arith.constant 0 : i32
    %c0_i32_0 = arith.constant 0 : i32
    %c0_i32_1 = arith.constant 0 : i32
    return %c0_i32, %c0_i32_0 : i32, i32
  }
  func.func @transform_6(%arg0: i32) -> (i32, i32) {
    %c0_i32 = arith.constant 0 : i32
    %c0_i32_0 = arith.constant 0 : i32
    %c0_i32_1 = arith.constant 0 : i32
    return %c0_i32, %c0_i32_0 : i32, i32
  }
  func.func @transform_7(%arg0: i32) -> (i32, i32) {
    %c0_i32 = arith.constant 0 : i32
    %c0_i32_0 = arith.constant 0 : i32
    return %c0_i32, %arg0 : i32, i32
  }
}

</mosaic_0001>

<llo_original>
// kernel: tpu_custom_call.1
$region0: #{tpu_custom_call.1}
  #allocation0 [shape = 'u32[]', space=smem, size = 0x4, offset = 0x4, fixed_abs, tag = 'smem constant byte address 0x4 - core index']
  #allocation1 [shape = 'u32[144,128]{1,0:T(1,128)}', space=vmem, size = 0x12000, scoped, tag = 'internal scratch']
  %s0 = inlined_call_operand.vmem [shape: f32[3,1024], index: 0, kind: input, shape index: {}]
  %s1 = inlined_call_operand.vmem [shape: f32[6,3], index: 1, kind: input, shape index: {}]
  %s2 = inlined_call_operand.vmem [shape: f32[6,1], index: 2, kind: input, shape index: {}]
  %s3 = inlined_call_operand.vmem [shape: f32[12,6], index: 3, kind: input, shape index: {}]
  %s4 = inlined_call_operand.vmem [shape: f32[12,1], index: 4, kind: input, shape index: {}]
  %s5 = inlined_call_operand.vmem [shape: f32[24,12], index: 5, kind: input, shape index: {}]
  %s6 = inlined_call_operand.vmem [shape: f32[24,1], index: 6, kind: input, shape index: {}]
  %s7 = inlined_call_operand.hbm [shape: f32[27,1024], index: 7, kind: output, shape index: {}]
  %s8 = sld [smem:[#allocation0]]
  $region38: #{tpu_custom_call.1} parent=0
    _
  %s10 = ssub.s32 1, %s8
  %s11 = scalar_select 0, %s10, %s8
  $region1: #{tpu_custom_call.1} parent=0
    #allocation2 [shape = 'u8[131072]{0}', space=vmem, size = 0x20000, scoped, tag = 'output window, operand 0, single buffered']
    #allocation3 [shape = 's32[1]{0}', space=sflag, size = 0x4, scoped, tag = 'scoped memory for tpu_custom_call.1']
    %12 = vsyncpa [#allocation3], 0
    // Predicated region
    $region2: #{tpu_custom_call.1} parent=1 // pred_check
      _
    $region3: #{tpu_custom_call.1} parent=1 // pred_check_branch
      %14 = sbr.rel (0) target = $region5
    $region4: #{tpu_custom_call.1} parent=1 // pred_region
      _
    $region5: #{tpu_custom_call.1} parent=1 // pred_fallthru
      _
    // Predicated region
    $region6: #{tpu_custom_call.1} parent=1 // pred_check
      _
    $region7: #{tpu_custom_call.1} parent=1 // pred_check_branch
      %16 = sbr.rel (0) target = $region9
    $region8: #{tpu_custom_call.1} parent=1 // pred_region
      _
    $region9: #{tpu_custom_call.1} parent=1 // pred_fallthru
      _
    // Predicated region
    $region10: #{tpu_custom_call.1} parent=1 // pred_check
      _
    $region11: #{tpu_custom_call.1} parent=1 // pred_check_branch
      %18 = sbr.rel (0) target = $region13
    $region12: #{tpu_custom_call.1} parent=1 // pred_region
      _
    $region13: #{tpu_custom_call.1} parent=1 // pred_fallthru
      _
    // Predicated region
    $region14: #{tpu_custom_call.1} parent=1 // pred_check
      _
    $region15: #{tpu_custom_call.1} parent=1 // pred_check_branch
      %20 = sbr.rel (0) target = $region17
    $region16: #{tpu_custom_call.1} parent=1 // pred_region
      _
    $region17: #{tpu_custom_call.1} parent=1 // pred_fallthru
      _
    // Predicated region
    $region18: #{tpu_custom_call.1} parent=1 // pred_check
      _
    $region19: #{tpu_custom_call.1} parent=1 // pred_check_branch
      %22 = sbr.rel (0) target = $region21
    $region20: #{tpu_custom_call.1} parent=1 // pred_region
      _
    $region21: #{tpu_custom_call.1} parent=1 // pred_fallthru
      _
    // Predicated region
    $region22: #{tpu_custom_call.1} parent=1 // pred_check
      _
    $region23: #{tpu_custom_call.1} parent=1 // pred_check_branch
      %24 = sbr.rel (0) target = $region25
    $region24: #{tpu_custom_call.1} parent=1 // pred_region
      _
    $region25: #{tpu_custom_call.1} parent=1 // pred_fallthru
      _
    // Predicated region
    $region26: #{tpu_custom_call.1} parent=1 // pred_check
      _
    $region27: #{tpu_custom_call.1} parent=1 // pred_check_branch
      %26 = sbr.rel (0) target = $region29
    $region28: #{tpu_custom_call.1} parent=1 // pred_region
      _
    $region29: #{tpu_custom_call.1} parent=1 // pred_fallthru
      _
    %v27 = vld [vmem:[%s0] sm:$0x77]
    %v28 = vld [vmem:[%s0 + $0x8] sm:$0x77]
    %v29 = vld [vmem:[%s0 + $0x10] sm:$0x77]
    %v30 = vld [vmem:[%s0 + $0x18] sm:$0x77]
    %v31 = vld [vmem:[%s1] sm:$0x3f]
    %v32 = vld [vmem:[%s2] sm:$0x3f]
    %34 = vset.pattern.permute.xlu0 0
    %35 = vperm.xlu0 %34, %v32
    %v36 = vpop.permute.xlu0 %35
    %39 = vset.pattern.permute.xlu0 0
    %40 = vperm.xlu0 %39, %v31
    %v41 = vpop.permute.xlu0 %40
    %v47 = vlaneseq
    %v48 = vshrl.u32 %v47, 7
    %v49 = vsub.s32 0, %v48
    %v50 = vrot.slane %v27, %v49
    %v51 = vlaneseq
    %v52 = vshrl.u32 %v51, 7
    %v53 = vsub.s32 4, %v52
    %v54 = vrot.slane %v27, %v53
    %v55 = vlaneseq
    %v56 = vshrl.u32 %v55, 7
    %v57 = vsub.s32 0, %v56
    %v58 = vrot.slane %v28, %v57
    %v59 = vlaneseq
    %v60 = vshrl.u32 %v59, 7
    %v61 = vsub.s32 4, %v60
    %v62 = vrot.slane %v28, %v61
    %v63 = vlaneseq
    %v64 = vshrl.u32 %v63, 7
    %v65 = vsub.s32 0, %v64
    %v66 = vrot.slane %v29, %v65
    %v67 = vlaneseq
    %v68 = vshrl.u32 %v67, 7
    %v69 = vsub.s32 4, %v68
    %v70 = vrot.slane %v29, %v69
    %v71 = vlaneseq
    %v72 = vshrl.u32 %v71, 7
    %v73 = vsub.s32 0, %v72
    %v74 = vrot.slane %v30, %v73
    %v75 = vlaneseq
    %v76 = vshrl.u32 %v75, 7
    %v77 = vsub.s32 4, %v76
    %v78 = vrot.slane %v30, %v77
    %v87 = vlaneseq
    %v88 = vshrl.u32 %v87, 7
    %v89 = vsub.s32 0, %v88
    %v90 = vrot.slane %v50, %v89
    %v91 = vlaneseq
    %v92 = vshrl.u32 %v91, 7
    %v93 = vsub.s32 0, %v92
    %v94 = vrot.slane %v54, %v93
    %v95 = vlaneseq
    %v96 = vshrl.u32 %v95, 7
    %v97 = vsub.s32 0, %v96
    %v98 = vrot.slane %v58, %v97
    %v99 = vlaneseq
    %v100 = vshrl.u32 %v99, 7
    %v101 = vsub.s32 0, %v100
    %v102 = vrot.slane %v62, %v101
    %v103 = vlaneseq
    %v104 = vshrl.u32 %v103, 7
    %v105 = vsub.s32 0, %v104
    %v106 = vrot.slane %v66, %v105
    %v107 = vlaneseq
    %v108 = vshrl.u32 %v107, 7
    %v109 = vsub.s32 0, %v108
    %v110 = vrot.slane %v70, %v109
    %v111 = vlaneseq
    %v112 = vshrl.u32 %v111, 7
    %v113 = vsub.s32 0, %v112
    %v114 = vrot.slane %v74, %v113
    %v115 = vlaneseq
    %v116 = vshrl.u32 %v115, 7
    %v117 = vsub.s32 0, %v116
    %v118 = vrot.slane %v78, %v117
    %v119 = vmul.f32 %v41, %v90
    %v120 = vmul.f32 %v41, %v94
    %v121 = vmul.f32 %v41, %v98
    %v122 = vmul.f32 %v41, %v102
    %v123 = vmul.f32 %v41, %v106
    %v124 = vmul.f32 %v41, %v110
    %v125 = vmul.f32 %v41, %v114
    %v126 = vmul.f32 %v41, %v118
    %v127 = vadd.f32 %v36, %v119
    %v128 = vadd.f32 %v36, %v120
    %v129 = vadd.f32 %v36, %v121
    %v130 = vadd.f32 %v36, %v122
    %v131 = vadd.f32 %v36, %v123
    %v132 = vadd.f32 %v36, %v124
    %v133 = vadd.f32 %v36, %v125
    %v134 = vadd.f32 %v36, %v126
    %135 = vset.pattern.permute.xlu0 1
    %136 = vperm.xlu0 %135, %v31
    %v137 = vpop.permute.xlu0 %136
    %v139 = vlaneseq
    %v140 = vshrl.u32 %v139, 7
    %v141 = vsub.s32 1, %v140
    %v142 = vrot.slane %v27, %v141
    %v143 = vlaneseq
    %v144 = vshrl.u32 %v143, 7
    %v145 = vsub.s32 5, %v144
    %v146 = vrot.slane %v27, %v145
    %v147 = vlaneseq
    %v148 = vshrl.u32 %v147, 7
    %v149 = vsub.s32 1, %v148
    %v150 = vrot.slane %v28, %v149
    %v151 = vlaneseq
    %v152 = vshrl.u32 %v151, 7
    %v153 = vsub.s32 5, %v152
    %v154 = vrot.slane %v28, %v153
    %v155 = vlaneseq
    %v156 = vshrl.u32 %v155, 7
    %v157 = vsub.s32 1, %v156
    %v158 = vrot.slane %v29, %v157
    %v159 = vlaneseq
    %v160 = vshrl.u32 %v159, 7
    %v161 = vsub.s32 5, %v160
    %v162 = vrot.slane %v29, %v161
    %v163 = vlaneseq
    %v164 = vshrl.u32 %v163, 7
    %v165 = vsub.s32 1, %v164
    %v166 = vrot.slane %v30, %v165
    %v167 = vlaneseq
    %v168 = vshrl.u32 %v167, 7
    %v169 = vsub.s32 5, %v168
    %v170 = vrot.slane %v30, %v169
    %v179 = vlaneseq
    %v180 = vshrl.u32 %v179, 7
    %v181 = vsub.s32 1, %v180
    %v182 = vrot.slane %v142, %v181
    %v183 = vlaneseq
    %v184 = vshrl.u32 %v183, 7
    %v185 = vsub.s32 1, %v184
    %v186 = vrot.slane %v146, %v185
    %v187 = vlaneseq
    %v188 = vshrl.u32 %v187, 7
    %v189 = vsub.s32 1, %v188
    %v190 = vrot.slane %v150, %v189
    %v191 = vlaneseq
    %v192 = vshrl.u32 %v191, 7
    %v193 = vsub.s32 1, %v192
    %v194 = vrot.slane %v154, %v193
    %v195 = vlaneseq
    %v196 = vshrl.u32 %v195, 7
    %v197 = vsub.s32 1, %v196
    %v198 = vrot.slane %v158, %v197
    %v199 = vlaneseq
    %v200 = vshrl.u32 %v199, 7
    %v201 = vsub.s32 1, %v200
    %v202 = vrot.slane %v162, %v201
    %v203 = vlaneseq
    %v204 = vshrl.u32 %v203, 7
    %v205 = vsub.s32 1, %v204
    %v206 = vrot.slane %v166, %v205
    %v207 = vlaneseq
    %v208 = vshrl.u32 %v207, 7
    %v209 = vsub.s32 1, %v208
    %v210 = vrot.slane %v170, %v209
    %v211 = vmul.f32 %v137, %v182
    %v212 = vmul.f32 %v137, %v186
    %v213 = vmul.f32 %v137, %v190
    %v214 = vmul.f32 %v137, %v194
    %v215 = vmul.f32 %v137, %v198
    %v216 = vmul.f32 %v137, %v202
    %v217 = vmul.f32 %v137, %v206
    %v218 = vmul.f32 %v137, %v210
    %v219 = vadd.f32 %v127, %v211
    %v220 = vadd.f32 %v128, %v212
    %v221 = vadd.f32 %v129, %v213
    %v222 = vadd.f32 %v130, %v214
    %v223 = vadd.f32 %v131, %v215
    %v224 = vadd.f32 %v132, %v216
    %v225 = vadd.f32 %v133, %v217
    %v226 = vadd.f32 %v134, %v218
    %227 = vset.pattern.permute.xlu0 2
    %228 = vperm.xlu0 %227, %v31
    %v229 = vpop.permute.xlu0 %228
    %v231 = vlaneseq
    %v232 = vshrl.u32 %v231, 7
    %v233 = vsub.s32 2, %v232
    %v234 = vrot.slane %v27, %v233
    %v235 = vlaneseq
    %v236 = vshrl.u32 %v235, 7
    %v237 = vsub.s32 6, %v236
    %v238 = vrot.slane %v27, %v237
    %v239 = vlaneseq
    %v240 = vshrl.u32 %v239, 7
    %v241 = vsub.s32 2, %v240
    %v242 = vrot.slane %v28, %v241
    %v243 = vlaneseq
    %v244 = vshrl.u32 %v243, 7
    %v245 = vsub.s32 6, %v244
    %v246 = vrot.slane %v28, %v245
    %v247 = vlaneseq
    %v248 = vshrl.u32 %v247, 7
    %v249 = vsub.s32 2, %v248
    %v250 = vrot.slane %v29, %v249
    %v251 = vlaneseq
    %v252 = vshrl.u32 %v251, 7
    %v253 = vsub.s32 6, %v252
    %v254 = vrot.slane %v29, %v253
    %v255 = vlaneseq
    %v256 = vshrl.u32 %v255, 7
    %v257 = vsub.s32 2, %v256
    %v258 = vrot.slane %v30, %v257
    %v259 = vlaneseq
    %v260 = vshrl.u32 %v259, 7
    %v261 = vsub.s32 6, %v260
    %v262 = vrot.slane %v30, %v261
    %v271 = vlaneseq
    %v272 = vshrl.u32 %v271, 7
    %v273 = vsub.s32 2, %v272
    %v274 = vrot.slane %v234, %v273
    %v275 = vlaneseq
    %v276 = vshrl.u32 %v275, 7
    %v277 = vsub.s32 2, %v276
    %v278 = vrot.slane %v238, %v277
    %v279 = vlaneseq
    %v280 = vshrl.u32 %v279, 7
    %v281 = vsub.s32 2, %v280
    %v282 = vrot.slane %v242, %v281
    %v283 = vlaneseq
    %v284 = vshrl.u32 %v283, 7
    %v285 = vsub.s32 2, %v284
    %v286 = vrot.slane %v246, %v285
    %v287 = vlaneseq
    %v288 = vshrl.u32 %v287, 7
    %v289 = vsub.s32 2, %v288
    %v290 = vrot.slane %v250, %v289
    %v291 = vlaneseq
    %v292 = vshrl.u32 %v291, 7
    %v293 = vsub.s32 2, %v292
    %v294 = vrot.slane %v254, %v293
    %v295 = vlaneseq
    %v296 = vshrl.u32 %v295, 7
    %v297 = vsub.s32 2, %v296
    %v298 = vrot.slane %v258, %v297
    %v299 = vlaneseq
    %v300 = vshrl.u32 %v299, 7
    %v301 = vsub.s32 2, %v300
    %v302 = vrot.slane %v262, %v301
    %v303 = vmul.f32 %v229, %v274
    %v304 = vmul.f32 %v229, %v278
    %v305 = vmul.f32 %v229, %v282
    %v306 = vmul.f32 %v229, %v286
    %v307 = vmul.f32 %v229, %v290
    %v308 = vmul.f32 %v229, %v294
    %v309 = vmul.f32 %v229, %v298
    %v310 = vmul.f32 %v229, %v302
    %v311 = vadd.f32 %v219, %v303
    %v312 = vadd.f32 %v220, %v304
    %v313 = vadd.f32 %v221, %v305
    %v314 = vadd.f32 %v222, %v306
    %v315 = vadd.f32 %v223, %v307
    %v316 = vadd.f32 %v224, %v308
    %v317 = vadd.f32 %v225, %v309
    %v318 = vadd.f32 %v226, %v310
    %v319 = vmax.f32 %v311, 0.0
    %v320 = vmax.f32 %v312, 0.0
    %v321 = vmax.f32 %v313, 0.0
    %v322 = vmax.f32 %v314, 0.0
    %v323 = vmax.f32 %v315, 0.0
    %v324 = vmax.f32 %v316, 0.0
    %v325 = vmax.f32 %v317, 0.0
    %v326 = vmax.f32 %v318, 0.0
    %v327 = vld [vmem:[%s3] sm:$0xff]
    %v328 = vld [vmem:[%s3 + $0x8] sm:$0xf]
    %v329 = vld [vmem:[%s4] sm:$0xff]
    %v330 = vld [vmem:[%s4 + $0x8] sm:$0xf]
    %332 = vset.pattern.permute.xlu0 0
    %333 = vperm.xlu0 %332, %v329
    %v334 = vpop.permute.xlu0 %333
    %337 = vset.pattern.permute.xlu0 0
    %338 = vperm.xlu0 %337, %v330
    %v339 = vpop.permute.xlu0 %338
    %342 = vset.pattern.permute.xlu0 0
    %343 = vperm.xlu0 %342, %v327
    %v344 = vpop.permute.xlu0 %343
    %347 = vset.pattern.permute.xlu0 0
    %348 = vperm.xlu0 %347, %v328
    %v349 = vpop.permute.xlu0 %348
    %v351 = vlaneseq
    %v352 = vshrl.u32 %v351, 7
    %v353 = vsub.s32 0, %v352
    %v354 = vrot.slane %v319, %v353
    %v355 = vlaneseq
    %v356 = vshrl.u32 %v355, 7
    %v357 = vsub.s32 0, %v356
    %v358 = vrot.slane %v320, %v357
    %v359 = vlaneseq
    %v360 = vshrl.u32 %v359, 7
    %v361 = vsub.s32 0, %v360
    %v362 = vrot.slane %v321, %v361
    %v363 = vlaneseq
    %v364 = vshrl.u32 %v363, 7
    %v365 = vsub.s32 0, %v364
    %v366 = vrot.slane %v322, %v365
    %v367 = vlaneseq
    %v368 = vshrl.u32 %v367, 7
    %v369 = vsub.s32 0, %v368
    %v370 = vrot.slane %v323, %v369
    %v371 = vlaneseq
    %v372 = vshrl.u32 %v371, 7
    %v373 = vsub.s32 0, %v372
    %v374 = vrot.slane %v324, %v373
    %v375 = vlaneseq
    %v376 = vshrl.u32 %v375, 7
    %v377 = vsub.s32 0, %v376
    %v378 = vrot.slane %v325, %v377
    %v379 = vlaneseq
    %v380 = vshrl.u32 %v379, 7
    %v381 = vsub.s32 0, %v380
    %v382 = vrot.slane %v326, %v381
    %v383 = vmul.f32 %v344, %v354
    %v384 = vmul.f32 %v344, %v358
    %v385 = vmul.f32 %v344, %v362
    %v386 = vmul.f32 %v344, %v366
    %v387 = vmul.f32 %v344, %v370
    %v388 = vmul.f32 %v344, %v374
    %v389 = vmul.f32 %v344, %v378
    %v390 = vmul.f32 %v344, %v382
    %v391 = vmul.f32 %v349, %v354
    %v392 = vmul.f32 %v349, %v358
    %v393 = vmul.f32 %v349, %v362
    %v394 = vmul.f32 %v349, %v366
    %v395 = vmul.f32 %v349, %v370
    %v396 = vmul.f32 %v349, %v374
    %v397 = vmul.f32 %v349, %v378
    %v398 = vmul.f32 %v349, %v382
    %v399 = vadd.f32 %v334, %v383
    %v400 = vadd.f32 %v334, %v384
    %v401 = vadd.f32 %v334, %v385
    %v402 = vadd.f32 %v334, %v386
    %v403 = vadd.f32 %v334, %v387
    %v404 = vadd.f32 %v334, %v388
    %v405 = vadd.f32 %v334, %v389
    %v406 = vadd.f32 %v334, %v390
    %v407 = vadd.f32 %v339, %v391
    %v408 = vadd.f32 %v339, %v392
    %v409 = vadd.f32 %v339, %v393
    %v410 = vadd.f32 %v339, %v394
    %v411 = vadd.f32 %v339, %v395
    %v412 = vadd.f32 %v339, %v396
    %v413 = vadd.f32 %v339, %v397
    %v414 = vadd.f32 %v339, %v398
    %415 = vset.pattern.permute.xlu0 1
    %416 = vperm.xlu0 %415, %v327
    %v417 = vpop.permute.xlu0 %416
    %419 = vset.pattern.permute.xlu0 1
    %420 = vperm.xlu0 %419, %v328
    %v421 = vpop.permute.xlu0 %420
    %v423 = vlaneseq
    %v424 = vshrl.u32 %v423, 7
    %v425 = vsub.s32 1, %v424
    %v426 = vrot.slane %v319, %v425
    %v427 = vlaneseq
    %v428 = vshrl.u32 %v427, 7
    %v429 = vsub.s32 1, %v428
    %v430 = vrot.slane %v320, %v429
    %v431 = vlaneseq
    %v432 = vshrl.u32 %v431, 7
    %v433 = vsub.s32 1, %v432
    %v434 = vrot.slane %v321, %v433
    %v435 = vlaneseq
    %v436 = vshrl.u32 %v435, 7
    %v437 = vsub.s32 1, %v436
    %v438 = vrot.slane %v322, %v437
    %v439 = vlaneseq
    %v440 = vshrl.u32 %v439, 7
    %v441 = vsub.s32 1, %v440
    %v442 = vrot.slane %v323, %v441
    %v443 = vlaneseq
    %v444 = vshrl.u32 %v443, 7
    %v445 = vsub.s32 1, %v444
    %v446 = vrot.slane %v324, %v445
    %v447 = vlaneseq
    %v448 = vshrl.u32 %v447, 7
    %v449 = vsub.s32 1, %v448
    %v450 = vrot.slane %v325, %v449
    %v451 = vlaneseq
    %v452 = vshrl.u32 %v451, 7
    %v453 = vsub.s32 1, %v452
    %v454 = vrot.slane %v326, %v453
    %v455 = vmul.f32 %v417, %v426
    %v456 = vmul.f32 %v417, %v430
    %v457 = vmul.f32 %v417, %v434
    %v458 = vmul.f32 %v417, %v438
    %v459 = vmul.f32 %v417, %v442
    %v460 = vmul.f32 %v417, %v446
    %v461 = vmul.f32 %v417, %v450
    %v462 = vmul.f32 %v417, %v454
    %v463 = vmul.f32 %v421, %v426
    %v464 = vmul.f32 %v421, %v430
    %v465 = vmul.f32 %v421, %v434
    %v466 = vmul.f32 %v421, %v438
    %v467 = vmul.f32 %v421, %v442
    %v468 = vmul.f32 %v421, %v446
    %v469 = vmul.f32 %v421, %v450
    %v470 = vmul.f32 %v421, %v454
    %v471 = vadd.f32 %v399, %v455
    %v472 = vadd.f32 %v400, %v456
    %v473 = vadd.f32 %v401, %v457
    %v474 = vadd.f32 %v402, %v458
    %v475 = vadd.f32 %v403, %v459
    %v476 = vadd.f32 %v404, %v460
    %v477 = vadd.f32 %v405, %v461
    %v478 = vadd.f32 %v406, %v462
    %v479 = vadd.f32 %v407, %v463
    %v480 = vadd.f32 %v408, %v464
    %v481 = vadd.f32 %v409, %v465
    %v482 = vadd.f32 %v410, %v466
    %v483 = vadd.f32 %v411, %v467
    %v484 = vadd.f32 %v412, %v468
    %v485 = vadd.f32 %v413, %v469
    %v486 = vadd.f32 %v414, %v470
    %487 = vset.pattern.permute.xlu0 2
    %488 = vperm.xlu0 %487, %v327
    %v489 = vpop.permute.xlu0 %488
    %491 = vset.pattern.permute.xlu0 2
    %492 = vperm.xlu0 %491, %v328
    %v493 = vpop.permute.xlu0 %492
    %v495 = vlaneseq
    %v496 = vshrl.u32 %v495, 7
    %v497 = vsub.s32 2, %v496
    %v498 = vrot.slane %v319, %v497
    %v499 = vlaneseq
    %v500 = vshrl.u32 %v499, 7
    %v501 = vsub.s32 2, %v500
    %v502 = vrot.slane %v320, %v501
    %v503 = vlaneseq
    %v504 = vshrl.u32 %v503, 7
    %v505 = vsub.s32 2, %v504
    %v506 = vrot.slane %v321, %v505
    %v507 = vlaneseq
    %v508 = vshrl.u32 %v507, 7
    %v509 = vsub.s32 2, %v508
    %v510 = vrot.slane %v322, %v509
    %v511 = vlaneseq
    %v512 = vshrl.u32 %v511, 7
    %v513 = vsub.s32 2, %v512
    %v514 = vrot.slane %v323, %v513
    %v515 = vlaneseq
    %v516 = vshrl.u32 %v515, 7
    %v517 = vsub.s32 2, %v516
    %v518 = vrot.slane %v324, %v517
    %v519 = vlaneseq
    %v520 = vshrl.u32 %v519, 7
    %v521 = vsub.s32 2, %v520
    %v522 = vrot.slane %v325, %v521
    %v523 = vlaneseq
    %v524 = vshrl.u32 %v523, 7
    %v525 = vsub.s32 2, %v524
    %v526 = vrot.slane %v326, %v525
    %v527 = vmul.f32 %v489, %v498
    %v528 = vmul.f32 %v489, %v502
    %v529 = vmul.f32 %v489, %v506
    %v530 = vmul.f32 %v489, %v510
    %v531 = vmul.f32 %v489, %v514
    %v532 = vmul.f32 %v489, %v518
    %v533 = vmul.f32 %v489, %v522
    %v534 = vmul.f32 %v489, %v526
    %v535 = vmul.f32 %v493, %v498
    %v536 = vmul.f32 %v493, %v502
    %v537 = vmul.f32 %v493, %v506
    %v538 = vmul.f32 %v493, %v510
    %v539 = vmul.f32 %v493, %v514
    %v540 = vmul.f32 %v493, %v518
    %v541 = vmul.f32 %v493, %v522
    %v542 = vmul.f32 %v493, %v526
    %v543 = vadd.f32 %v471, %v527
    %v544 = vadd.f32 %v472, %v528
    %v545 = vadd.f32 %v473, %v529
    %v546 = vadd.f32 %v474, %v530
    %v547 = vadd.f32 %v475, %v531
    %v548 = vadd.f32 %v476, %v532
    %v549 = vadd.f32 %v477, %v533
    %v550 = vadd.f32 %v478, %v534
    %v551 = vadd.f32 %v479, %v535
    %v552 = vadd.f32 %v480, %v536
    %v553 = vadd.f32 %v481, %v537
    %v554 = vadd.f32 %v482, %v538
    %v555 = vadd.f32 %v483, %v539
    %v556 = vadd.f32 %v484, %v540
    %v557 = vadd.f32 %v485, %v541
    %v558 = vadd.f32 %v486, %v542
    %559 = vset.pattern.permute.xlu0 3
    %560 = vperm.xlu0 %559, %v327
    %v561 = vpop.permute.xlu0 %560
    %563 = vset.pattern.permute.xlu0 3
    %564 = vperm.xlu0 %563, %v328
    %v565 = vpop.permute.xlu0 %564
    %v567 = vlaneseq
    %v568 = vshrl.u32 %v567, 7
    %v569 = vsub.s32 3, %v568
    %v570 = vrot.slane %v319, %v569
    %v571 = vlaneseq
    %v572 = vshrl.u32 %v571, 7
    %v573 = vsub.s32 3, %v572
    %v574 = vrot.slane %v320, %v573
    %v575 = vlaneseq
    %v576 = vshrl.u32 %v575, 7
    %v577 = vsub.s32 3, %v576
    %v578 = vrot.slane %v321, %v577
    %v579 = vlaneseq
    %v580 = vshrl.u32 %v579, 7
    %v581 = vsub.s32 3, %v580
    %v582 = vrot.slane %v322, %v581
    %v583 = vlaneseq
    %v584 = vshrl.u32 %v583, 7
    %v585 = vsub.s32 3, %v584
    %v586 = vrot.slane %v323, %v585
    %v587 = vlaneseq
    %v588 = vshrl.u32 %v587, 7
    %v589 = vsub.s32 3, %v588
    %v590 = vrot.slane %v324, %v589
    %v591 = vlaneseq
    %v592 = vshrl.u32 %v591, 7
    %v593 = vsub.s32 3, %v592
    %v594 = vrot.slane %v325, %v593
    %v595 = vlaneseq
    %v596 = vshrl.u32 %v595, 7
    %v597 = vsub.s32 3, %v596
    %v598 = vrot.slane %v326, %v597
    %v599 = vmul.f32 %v561, %v570
    %v600 = vmul.f32 %v561, %v574
    %v601 = vmul.f32 %v561, %v578
    %v602 = vmul.f32 %v561, %v582
    %v603 = vmul.f32 %v561, %v586
    %v604 = vmul.f32 %v561, %v590
    %v605 = vmul.f32 %v561, %v594
    %v606 = vmul.f32 %v561, %v598
    %v607 = vmul.f32 %v565, %v570
    %v608 = vmul.f32 %v565, %v574
    %v609 = vmul.f32 %v565, %v578
    %v610 = vmul.f32 %v565, %v582
    %v611 = vmul.f32 %v565, %v586
    %v612 = vmul.f32 %v565, %v590
    %v613 = vmul.f32 %v565, %v594
    %v614 = vmul.f32 %v565, %v598
    %v615 = vadd.f32 %v543, %v599
    %v616 = vadd.f32 %v544, %v600
    %v617 = vadd.f32 %v545, %v601
    %v618 = vadd.f32 %v546, %v602
    %v619 = vadd.f32 %v547, %v603
    %v620 = vadd.f32 %v548, %v604
    %v621 = vadd.f32 %v549, %v605
    %v622 = vadd.f32 %v550, %v606
    %v623 = vadd.f32 %v551, %v607
    %v624 = vadd.f32 %v552, %v608
    %v625 = vadd.f32 %v553, %v609
    %v626 = vadd.f32 %v554, %v610
    %v627 = vadd.f32 %v555, %v611
    %v628 = vadd.f32 %v556, %v612
    %v629 = vadd.f32 %v557, %v613
    %v630 = vadd.f32 %v558, %v614
    %631 = vset.pattern.permute.xlu0 4
    %632 = vperm.xlu0 %631, %v327
    %v633 = vpop.permute.xlu0 %632
    %635 = vset.pattern.permute.xlu0 4
    %636 = vperm.xlu0 %635, %v328
    %v637 = vpop.permute.xlu0 %636
    %v639 = vlaneseq
    %v640 = vshrl.u32 %v639, 7
    %v641 = vsub.s32 4, %v640
    %v642 = vrot.slane %v319, %v641
    %v643 = vlaneseq
    %v644 = vshrl.u32 %v643, 7
    %v645 = vsub.s32 4, %v644
    %v646 = vrot.slane %v320, %v645
    %v647 = vlaneseq
    %v648 = vshrl.u32 %v647, 7
    %v649 = vsub.s32 4, %v648
    %v650 = vrot.slane %v321, %v649
    %v651 = vlaneseq
    %v652 = vshrl.u32 %v651, 7
    %v653 = vsub.s32 4, %v652
    %v654 = vrot.slane %v322, %v653
    %v655 = vlaneseq
    %v656 = vshrl.u32 %v655, 7
    %v657 = vsub.s32 4, %v656
    %v658 = vrot.slane %v323, %v657
    %v659 = vlaneseq
    %v660 = vshrl.u32 %v659, 7
    %v661 = vsub.s32 4, %v660
    %v662 = vrot.slane %v324, %v661
    %v663 = vlaneseq
    %v664 = vshrl.u32 %v663, 7
    %v665 = vsub.s32 4, %v664
    %v666 = vrot.slane %v325, %v665
    %v667 = vlaneseq
    %v668 = vshrl.u32 %v667, 7
    %v669 = vsub.s32 4, %v668
    %v670 = vrot.slane %v326, %v669
    %v671 = vmul.f32 %v633, %v642
    %v672 = vmul.f32 %v633, %v646
    %v673 = vmul.f32 %v633, %v650
    %v674 = vmul.f32 %v633, %v654
    %v675 = vmul.f32 %v633, %v658
    %v676 = vmul.f32 %v633, %v662
    %v677 = vmul.f32 %v633, %v666
    %v678 = vmul.f32 %v633, %v670
    %v679 = vmul.f32 %v637, %v642
    %v680 = vmul.f32 %v637, %v646
    %v681 = vmul.f32 %v637, %v650
    %v682 = vmul.f32 %v637, %v654
    %v683 = vmul.f32 %v637, %v658
    %v684 = vmul.f32 %v637, %v662
    %v685 = vmul.f32 %v637, %v666
    %v686 = vmul.f32 %v637, %v670
    %v687 = vadd.f32 %v615, %v671
    %v688 = vadd.f32 %v616, %v672
    %v689 = vadd.f32 %v617, %v673
    %v690 = vadd.f32 %v618, %v674
    %v691 = vadd.f32 %v619, %v675
    %v692 = vadd.f32 %v620, %v676
    %v693 = vadd.f32 %v621, %v677
    %v694 = vadd.f32 %v622, %v678
    %v695 = vadd.f32 %v623, %v679
    %v696 = vadd.f32 %v624, %v680
    %v697 = vadd.f32 %v625, %v681
    %v698 = vadd.f32 %v626, %v682
    %v699 = vadd.f32 %v627, %v683
    %v700 = vadd.f32 %v628, %v684
    %v701 = vadd.f32 %v629, %v685
    %v702 = vadd.f32 %v630, %v686
    %703 = vset.pattern.permute.xlu0 5
    %704 = vperm.xlu0 %703, %v327
    %v705 = vpop.permute.xlu0 %704
    %707 = vset.pattern.permute.xlu0 5
    %708 = vperm.xlu0 %707, %v328
    %v709 = vpop.permute.xlu0 %708
    %v711 = vlaneseq
    %v712 = vshrl.u32 %v711, 7
    %v713 = vsub.s32 5, %v712
    %v714 = vrot.slane %v319, %v713
    %v715 = vlaneseq
    %v716 = vshrl.u32 %v715, 7
    %v717 = vsub.s32 5, %v716
    %v718 = vrot.slane %v320, %v717
    %v719 = vlaneseq
    %v720 = vshrl.u32 %v719, 7
    %v721 = vsub.s32 5, %v720
    %v722 = vrot.slane %v321, %v721
    %v723 = vlaneseq
    %v724 = vshrl.u32 %v723, 7
    %v725 = vsub.s32 5, %v724
    %v726 = vrot.slane %v322, %v725
    %v727 = vlaneseq
    %v728 = vshrl.u32 %v727, 7
    %v729 = vsub.s32 5, %v728
    %v730 = vrot.slane %v323, %v729
    %v731 = vlaneseq
    %v732 = vshrl.u32 %v731, 7
    %v733 = vsub.s32 5, %v732
    %v734 = vrot.slane %v324, %v733
    %v735 = vlaneseq
    %v736 = vshrl.u32 %v735, 7
    %v737 = vsub.s32 5, %v736
    %v738 = vrot.slane %v325, %v737
    %v739 = vlaneseq
    %v740 = vshrl.u32 %v739, 7
    %v741 = vsub.s32 5, %v740
    %v742 = vrot.slane %v326, %v741
    %v743 = vmul.f32 %v705, %v714
    %v744 = vmul.f32 %v705, %v718
    %v745 = vmul.f32 %v705, %v722
    %v746 = vmul.f32 %v705, %v726
    %v747 = vmul.f32 %v705, %v730
    %v748 = vmul.f32 %v705, %v734
    %v749 = vmul.f32 %v705, %v738
    %v750 = vmul.f32 %v705, %v742
    %v751 = vmul.f32 %v709, %v714
    %v752 = vmul.f32 %v709, %v718
    %v753 = vmul.f32 %v709, %v722
    %v754 = vmul.f32 %v709, %v726
    %v755 = vmul.f32 %v709, %v730
    %v756 = vmul.f32 %v709, %v734
    %v757 = vmul.f32 %v709, %v738
    %v758 = vmul.f32 %v709, %v742
    %v759 = vadd.f32 %v687, %v743
    %v760 = vadd.f32 %v688, %v744
    %v761 = vadd.f32 %v689, %v745
    %v762 = vadd.f32 %v690, %v746
    %v763 = vadd.f32 %v691, %v747
    %v764 = vadd.f32 %v692, %v748
    %v765 = vadd.f32 %v693, %v749
    %v766 = vadd.f32 %v694, %v750
    %v767 = vadd.f32 %v695, %v751
    %v768 = vadd.f32 %v696, %v752
    %v769 = vadd.f32 %v697, %v753
    %v770 = vadd.f32 %v698, %v754
    %v771 = vadd.f32 %v699, %v755
    %v772 = vadd.f32 %v700, %v756
    %v773 = vadd.f32 %v701, %v757
    %v774 = vadd.f32 %v702, %v758
    %v775 = vmax.f32 %v759, 0.0
    %v776 = vmax.f32 %v760, 0.0
    %v777 = vmax.f32 %v761, 0.0
    %v778 = vmax.f32 %v762, 0.0
    %v779 = vmax.f32 %v763, 0.0
    %v780 = vmax.f32 %v764, 0.0
    %v781 = vmax.f32 %v765, 0.0
    %v782 = vmax.f32 %v766, 0.0
    %v783 = vmax.f32 %v767, 0.0
    %v784 = vmax.f32 %v768, 0.0
    %v785 = vmax.f32 %v769, 0.0
    %v786 = vmax.f32 %v770, 0.0
    %v787 = vmax.f32 %v771, 0.0
    %v788 = vmax.f32 %v772, 0.0
    %v789 = vmax.f32 %v773, 0.0
    %v790 = vmax.f32 %v774, 0.0
    %v791 = vld [vmem:[%s5] sm:$0xff]
    %v792 = vld [vmem:[%s5 + $0x8] sm:$0xff]
    %v793 = vld [vmem:[%s5 + $0x10] sm:$0xff]
    %v794 = vld [vmem:[%s6] sm:$0xff]
    %v795 = vld [vmem:[%s6 + $0x8] sm:$0xff]
    %v796 = vld [vmem:[%s6 + $0x10] sm:$0xff]
    %798 = vset.pattern.permute.xlu0 0
    %799 = vperm.xlu0 %798, %v794
    %v800 = vpop.permute.xlu0 %799
    %803 = vset.pattern.permute.xlu0 0
    %804 = vperm.xlu0 %803, %v795
    %v805 = vpop.permute.xlu0 %804
    %808 = vset.pattern.permute.xlu0 0
    %809 = vperm.xlu0 %808, %v796
    %v810 = vpop.permute.xlu0 %809
    %813 = vset.pattern.permute.xlu0 0
    %814 = vperm.xlu0 %813, %v791
    %v815 = vpop.permute.xlu0 %814
    %818 = vset.pattern.permute.xlu0 0
    %819 = vperm.xlu0 %818, %v792
    %v820 = vpop.permute.xlu0 %819
    %823 = vset.pattern.permute.xlu0 0
    %824 = vperm.xlu0 %823, %v793
    %v825 = vpop.permute.xlu0 %824
    %v827 = vlaneseq
    %v828 = vshrl.u32 %v827, 7
    %v829 = vsub.s32 0, %v828
    %v830 = vrot.slane %v775, %v829
    %v831 = vlaneseq
    %v832 = vshrl.u32 %v831, 7
    %v833 = vsub.s32 0, %v832
    %v834 = vrot.slane %v776, %v833
    %v835 = vlaneseq
    %v836 = vshrl.u32 %v835, 7
    %v837 = vsub.s32 0, %v836
    %v838 = vrot.slane %v777, %v837
    %v839 = vlaneseq
    %v840 = vshrl.u32 %v839, 7
    %v841 = vsub.s32 0, %v840
    %v842 = vrot.slane %v778, %v841
    %v843 = vlaneseq
    %v844 = vshrl.u32 %v843, 7
    %v845 = vsub.s32 0, %v844
    %v846 = vrot.slane %v779, %v845
    %v847 = vlaneseq
    %v848 = vshrl.u32 %v847, 7
    %v849 = vsub.s32 0, %v848
    %v850 = vrot.slane %v780, %v849
    %v851 = vlaneseq
    %v852 = vshrl.u32 %v851, 7
    %v853 = vsub.s32 0, %v852
    %v854 = vrot.slane %v781, %v853
    %v855 = vlaneseq
    %v856 = vshrl.u32 %v855, 7
    %v857 = vsub.s32 0, %v856
    %v858 = vrot.slane %v782, %v857
    %v859 = vmul.f32 %v815, %v830
    %v860 = vmul.f32 %v815, %v834
    %v861 = vmul.f32 %v815, %v838
    %v862 = vmul.f32 %v815, %v842
    %v863 = vmul.f32 %v815, %v846
    %v864 = vmul.f32 %v815, %v850
    %v865 = vmul.f32 %v815, %v854
    %v866 = vmul.f32 %v815, %v858
    %v867 = vmul.f32 %v820, %v830
    %v868 = vmul.f32 %v820, %v834
    %v869 = vmul.f32 %v820, %v838
    %v870 = vmul.f32 %v820, %v842
    %v871 = vmul.f32 %v820, %v846
    %v872 = vmul.f32 %v820, %v850
    %v873 = vmul.f32 %v820, %v854
    %v874 = vmul.f32 %v820, %v858
    %v875 = vmul.f32 %v825, %v830
    %v876 = vmul.f32 %v825, %v834
    %v877 = vmul.f32 %v825, %v838
    %v878 = vmul.f32 %v825, %v842
    %v879 = vmul.f32 %v825, %v846
    %v880 = vmul.f32 %v825, %v850
    %v881 = vmul.f32 %v825, %v854
    %v882 = vmul.f32 %v825, %v858
    %v883 = vadd.f32 %v800, %v859
    %v884 = vadd.f32 %v800, %v860
    %v885 = vadd.f32 %v800, %v861
    %v886 = vadd.f32 %v800, %v862
    %v887 = vadd.f32 %v800, %v863
    %v888 = vadd.f32 %v800, %v864
    %v889 = vadd.f32 %v800, %v865
    %v890 = vadd.f32 %v800, %v866
    %v891 = vadd.f32 %v805, %v867
    %v892 = vadd.f32 %v805, %v868
    %v893 = vadd.f32 %v805, %v869
    %v894 = vadd.f32 %v805, %v870
    %v895 = vadd.f32 %v805, %v871
    %v896 = vadd.f32 %v805, %v872
    %v897 = vadd.f32 %v805, %v873
    %v898 = vadd.f32 %v805, %v874
    %v899 = vadd.f32 %v810, %v875
    %v900 = vadd.f32 %v810, %v876
    %v901 = vadd.f32 %v810, %v877
    %v902 = vadd.f32 %v810, %v878
    %v903 = vadd.f32 %v810, %v879
    %v904 = vadd.f32 %v810, %v880
    %v905 = vadd.f32 %v810, %v881
    %v906 = vadd.f32 %v810, %v882
    %907 = vset.pattern.permute.xlu0 1
    %908 = vperm.xlu0 %907, %v791
    %v909 = vpop.permute.xlu0 %908
    %911 = vset.pattern.permute.xlu0 1
    %912 = vperm.xlu0 %911, %v792
    %v913 = vpop.permute.xlu0 %912
    %915 = vset.pattern.permute.xlu0 1
    %916 = vperm.xlu0 %915, %v793
    %v917 = vpop.permute.xlu0 %916
    %v919 = vlaneseq
    %v920 = vshrl.u32 %v919, 7
    %v921 = vsub.s32 1, %v920
    %v922 = vrot.slane %v775, %v921
    %v923 = vlaneseq
    %v924 = vshrl.u32 %v923, 7
    %v925 = vsub.s32 1, %v924
    %v926 = vrot.slane %v776, %v925
    %v927 = vlaneseq
    %v928 = vshrl.u32 %v927, 7
    %v929 = vsub.s32 1, %v928
    %v930 = vrot.slane %v777, %v929
    %v931 = vlaneseq
    %v932 = vshrl.u32 %v931, 7
    %v933 = vsub.s32 1, %v932
    %v934 = vrot.slane %v778, %v933
    %v935 = vlaneseq
    %v936 = vshrl.u32 %v935, 7
    %v937 = vsub.s32 1, %v936
    %v938 = vrot.slane %v779, %v937
    %v939 = vlaneseq
    %v940 = vshrl.u32 %v939, 7
    %v941 = vsub.s32 1, %v940
    %v942 = vrot.slane %v780, %v941
    %v943 = vlaneseq
    %v944 = vshrl.u32 %v943, 7
    %v945 = vsub.s32 1, %v944
    %v946 = vrot.slane %v781, %v945
    %v947 = vlaneseq
    %v948 = vshrl.u32 %v947, 7
    %v949 = vsub.s32 1, %v948
    %v950 = vrot.slane %v782, %v949
    %v951 = vmul.f32 %v909, %v922
    %v952 = vmul.f32 %v909, %v926
    %v953 = vmul.f32 %v909, %v930
    %v954 = vmul.f32 %v909, %v934
    %v955 = vmul.f32 %v909, %v938
    %v956 = vmul.f32 %v909, %v942
    %v957 = vmul.f32 %v909, %v946
    %v958 = vmul.f32 %v909, %v950
    %v959 = vmul.f32 %v913, %v922
    %v960 = vmul.f32 %v913, %v926
    %v961 = vmul.f32 %v913, %v930
    %v962 = vmul.f32 %v913, %v934
    %v963 = vmul.f32 %v913, %v938
    %v964 = vmul.f32 %v913, %v942
    %v965 = vmul.f32 %v913, %v946
    %v966 = vmul.f32 %v913, %v950
    %v967 = vmul.f32 %v917, %v922
    %v968 = vmul.f32 %v917, %v926
    %v969 = vmul.f32 %v917, %v930
    %v970 = vmul.f32 %v917, %v934
    %v971 = vmul.f32 %v917, %v938
    %v972 = vmul.f32 %v917, %v942
    %v973 = vmul.f32 %v917, %v946
    %v974 = vmul.f32 %v917, %v950
    %v975 = vadd.f32 %v883, %v951
    %v976 = vadd.f32 %v884, %v952
    %v977 = vadd.f32 %v885, %v953
    %v978 = vadd.f32 %v886, %v954
    %v979 = vadd.f32 %v887, %v955
    %v980 = vadd.f32 %v888, %v956
    %v981 = vadd.f32 %v889, %v957
    %v982 = vadd.f32 %v890, %v958
    %v983 = vadd.f32 %v891, %v959
    %v984 = vadd.f32 %v892, %v960
    %v985 = vadd.f32 %v893, %v961
    %v986 = vadd.f32 %v894, %v962
    %v987 = vadd.f32 %v895, %v963
    %v988 = vadd.f32 %v896, %v964
    %v989 = vadd.f32 %v897, %v965
    %v990 = vadd.f32 %v898, %v966
    %v991 = vadd.f32 %v899, %v967
    %v992 = vadd.f32 %v900, %v968
    %v993 = vadd.f32 %v901, %v969
    %v994 = vadd.f32 %v902, %v970
    %v995 = vadd.f32 %v903, %v971
    %v996 = vadd.f32 %v904, %v972
    %v997 = vadd.f32 %v905, %v973
    %v998 = vadd.f32 %v906, %v974
    %999 = vset.pattern.permute.xlu0 2
    %1000 = vperm.xlu0 %999, %v791
    %v1001 = vpop.permute.xlu0 %1000
    %1003 = vset.pattern.permute.xlu0 2
    %1004 = vperm.xlu0 %1003, %v792
    %v1005 = vpop.permute.xlu0 %1004
    %1007 = vset.pattern.permute.xlu0 2
    %1008 = vperm.xlu0 %1007, %v793
    %v1009 = vpop.permute.xlu0 %1008
    %v1011 = vlaneseq
    %v1012 = vshrl.u32 %v1011, 7
    %v1013 = vsub.s32 2, %v1012
    %v1014 = vrot.slane %v775, %v1013
    %v1015 = vlaneseq
    %v1016 = vshrl.u32 %v1015, 7
    %v1017 = vsub.s32 2, %v1016
    %v1018 = vrot.slane %v776, %v1017
    %v1019 = vlaneseq
    %v1020 = vshrl.u32 %v1019, 7
    %v1021 = vsub.s32 2, %v1020
    %v1022 = vrot.slane %v777, %v1021
    %v1023 = vlaneseq
    %v1024 = vshrl.u32 %v1023, 7
    %v1025 = vsub.s32 2, %v1024
    %v1026 = vrot.slane %v778, %v1025
    %v1027 = vlaneseq
    %v1028 = vshrl.u32 %v1027, 7
    %v1029 = vsub.s32 2, %v1028
    %v1030 = vrot.slane %v779, %v1029
    %v1031 = vlaneseq
    %v1032 = vshrl.u32 %v1031, 7
    %v1033 = vsub.s32 2, %v1032
    %v1034 = vrot.slane %v780, %v1033
    %v1035 = vlaneseq
    %v1036 = vshrl.u32 %v1035, 7
    %v1037 = vsub.s32 2, %v1036
    %v1038 = vrot.slane %v781, %v1037
    %v1039 = vlaneseq
    %v1040 = vshrl.u32 %v1039, 7
    %v1041 = vsub.s32 2, %v1040
    %v1042 = vrot.slane %v782, %v1041
    %v1043 = vmul.f32 %v1001, %v1014
    %v1044 = vmul.f32 %v1001, %v1018
    %v1045 = vmul.f32 %v1001, %v1022
    %v1046 = vmul.f32 %v1001, %v1026
    %v1047 = vmul.f32 %v1001, %v1030
    %v1048 = vmul.f32 %v1001, %v1034
    %v1049 = vmul.f32 %v1001, %v1038
    %v1050 = vmul.f32 %v1001, %v1042
    %v1051 = vmul.f32 %v1005, %v1014
    %v1052 = vmul.f32 %v1005, %v1018
    %v1053 = vmul.f32 %v1005, %v1022
    %v1054 = vmul.f32 %v1005, %v1026
    %v1055 = vmul.f32 %v1005, %v1030
    %v1056 = vmul.f32 %v1005, %v1034
    %v1057 = vmul.f32 %v1005, %v1038
    %v1058 = vmul.f32 %v1005, %v1042
    %v1059 = vmul.f32 %v1009, %v1014
    %v1060 = vmul.f32 %v1009, %v1018
    %v1061 = vmul.f32 %v1009, %v1022
    %v1062 = vmul.f32 %v1009, %v1026
    %v1063 = vmul.f32 %v1009, %v1030
    %v1064 = vmul.f32 %v1009, %v1034
    %v1065 = vmul.f32 %v1009, %v1038
    %v1066 = vmul.f32 %v1009, %v1042
    %v1067 = vadd.f32 %v975, %v1043
    %v1068 = vadd.f32 %v976, %v1044
    %v1069 = vadd.f32 %v977, %v1045
    %v1070 = vadd.f32 %v978, %v1046
    %v1071 = vadd.f32 %v979, %v1047
    %v1072 = vadd.f32 %v980, %v1048
    %v1073 = vadd.f32 %v981, %v1049
    %v1074 = vadd.f32 %v982, %v1050
    %v1075 = vadd.f32 %v983, %v1051
    %v1076 = vadd.f32 %v984, %v1052
    %v1077 = vadd.f32 %v985, %v1053
    %v1078 = vadd.f32 %v986, %v1054
    %v1079 = vadd.f32 %v987, %v1055
    %v1080 = vadd.f32 %v988, %v1056
    %v1081 = vadd.f32 %v989, %v1057
    %v1082 = vadd.f32 %v990, %v1058
    %v1083 = vadd.f32 %v991, %v1059
    %v1084 = vadd.f32 %v992, %v1060
    %v1085 = vadd.f32 %v993, %v1061
    %v1086 = vadd.f32 %v994, %v1062
    %v1087 = vadd.f32 %v995, %v1063
    %v1088 = vadd.f32 %v996, %v1064
    %v1089 = vadd.f32 %v997, %v1065
    %v1090 = vadd.f32 %v998, %v1066
    %1091 = vset.pattern.permute.xlu0 3
    %1092 = vperm.xlu0 %1091, %v791
    %v1093 = vpop.permute.xlu0 %1092
    %1095 = vset.pattern.permute.xlu0 3
    %1096 = vperm.xlu0 %1095, %v792
    %v1097 = vpop.permute.xlu0 %1096
    %1099 = vset.pattern.permute.xlu0 3
    %1100 = vperm.xlu0 %1099, %v793
    %v1101 = vpop.permute.xlu0 %1100
    %v1103 = vlaneseq
    %v1104 = vshrl.u32 %v1103, 7
    %v1105 = vsub.s32 3, %v1104
    %v1106 = vrot.slane %v775, %v1105
    %v1107 = vlaneseq
    %v1108 = vshrl.u32 %v1107, 7
    %v1109 = vsub.s32 3, %v1108
    %v1110 = vrot.slane %v776, %v1109
    %v1111 = vlaneseq
    %v1112 = vshrl.u32 %v1111, 7
    %v1113 = vsub.s32 3, %v1112
    %v1114 = vrot.slane %v777, %v1113
    %v1115 = vlaneseq
    %v1116 = vshrl.u32 %v1115, 7
    %v1117 = vsub.s32 3, %v1116
    %v1118 = vrot.slane %v778, %v1117
    %v1119 = vlaneseq
    %v1120 = vshrl.u32 %v1119, 7
    %v1121 = vsub.s32 3, %v1120
    %v1122 = vrot.slane %v779, %v1121
    %v1123 = vlaneseq
    %v1124 = vshrl.u32 %v1123, 7
    %v1125 = vsub.s32 3, %v1124
    %v1126 = vrot.slane %v780, %v1125
    %v1127 = vlaneseq
    %v1128 = vshrl.u32 %v1127, 7
    %v1129 = vsub.s32 3, %v1128
    %v1130 = vrot.slane %v781, %v1129
    %v1131 = vlaneseq
    %v1132 = vshrl.u32 %v1131, 7
    %v1133 = vsub.s32 3, %v1132
    %v1134 = vrot.slane %v782, %v1133
    %v1135 = vmul.f32 %v1093, %v1106
    %v1136 = vmul.f32 %v1093, %v1110
    %v1137 = vmul.f32 %v1093, %v1114
    %v1138 = vmul.f32 %v1093, %v1118
    %v1139 = vmul.f32 %v1093, %v1122
    %v1140 = vmul.f32 %v1093, %v1126
    %v1141 = vmul.f32 %v1093, %v1130
    %v1142 = vmul.f32 %v1093, %v1134
    %v1143 = vmul.f32 %v1097, %v1106
    %v1144 = vmul.f32 %v1097, %v1110
    %v1145 = vmul.f32 %v1097, %v1114
    %v1146 = vmul.f32 %v1097, %v1118
    %v1147 = vmul.f32 %v1097, %v1122
    %v1148 = vmul.f32 %v1097, %v1126
    %v1149 = vmul.f32 %v1097, %v1130
    %v1150 = vmul.f32 %v1097, %v1134
    %v1151 = vmul.f32 %v1101, %v1106
    %v1152 = vmul.f32 %v1101, %v1110
    %v1153 = vmul.f32 %v1101, %v1114
    %v1154 = vmul.f32 %v1101, %v1118
    %v1155 = vmul.f32 %v1101, %v1122
    %v1156 = vmul.f32 %v1101, %v1126
    %v1157 = vmul.f32 %v1101, %v1130
    %v1158 = vmul.f32 %v1101, %v1134
    %v1159 = vadd.f32 %v1067, %v1135
    %v1160 = vadd.f32 %v1068, %v1136
    %v1161 = vadd.f32 %v1069, %v1137
    %v1162 = vadd.f32 %v1070, %v1138
    %v1163 = vadd.f32 %v1071, %v1139
    %v1164 = vadd.f32 %v1072, %v1140
    %v1165 = vadd.f32 %v1073, %v1141
    %v1166 = vadd.f32 %v1074, %v1142
    %v1167 = vadd.f32 %v1075, %v1143
    %v1168 = vadd.f32 %v1076, %v1144
    %v1169 = vadd.f32 %v1077, %v1145
    %v1170 = vadd.f32 %v1078, %v1146
    %v1171 = vadd.f32 %v1079, %v1147
    %v1172 = vadd.f32 %v1080, %v1148
    %v1173 = vadd.f32 %v1081, %v1149
    %v1174 = vadd.f32 %v1082, %v1150
    %v1175 = vadd.f32 %v1083, %v1151
    %v1176 = vadd.f32 %v1084, %v1152
    %v1177 = vadd.f32 %v1085, %v1153
    %v1178 = vadd.f32 %v1086, %v1154
    %v1179 = vadd.f32 %v1087, %v1155
    %v1180 = vadd.f32 %v1088, %v1156
    %v1181 = vadd.f32 %v1089, %v1157
    %v1182 = vadd.f32 %v1090, %v1158
    %1183 = vset.pattern.permute.xlu0 4
    %1184 = vperm.xlu0 %1183, %v791
    %v1185 = vpop.permute.xlu0 %1184
    %1187 = vset.pattern.permute.xlu0 4
    %1188 = vperm.xlu0 %1187, %v792
    %v1189 = vpop.permute.xlu0 %1188
    %1191 = vset.pattern.permute.xlu0 4
    %1192 = vperm.xlu0 %1191, %v793
    %v1193 = vpop.permute.xlu0 %1192
    %v1195 = vlaneseq
    %v1196 = vshrl.u32 %v1195, 7
    %v1197 = vsub.s32 4, %v1196
    %v1198 = vrot.slane %v775, %v1197
    %v1199 = vlaneseq
    %v1200 = vshrl.u32 %v1199, 7
    %v1201 = vsub.s32 4, %v1200
    %v1202 = vrot.slane %v776, %v1201
    %v1203 = vlaneseq
    %v1204 = vshrl.u32 %v1203, 7
    %v1205 = vsub.s32 4, %v1204
    %v1206 = vrot.slane %v777, %v1205
    %v1207 = vlaneseq
    %v1208 = vshrl.u32 %v1207, 7
    %v1209 = vsub.s32 4, %v1208
    %v1210 = vrot.slane %v778, %v1209
    %v1211 = vlaneseq
    %v1212 = vshrl.u32 %v1211, 7
    %v1213 = vsub.s32 4, %v1212
    %v1214 = vrot.slane %v779, %v1213
    %v1215 = vlaneseq
    %v1216 = vshrl.u32 %v1215, 7
    %v1217 = vsub.s32 4, %v1216
    %v1218 = vrot.slane %v780, %v1217
    %v1219 = vlaneseq
    %v1220 = vshrl.u32 %v1219, 7
    %v1221 = vsub.s32 4, %v1220
    %v1222 = vrot.slane %v781, %v1221
    %v1223 = vlaneseq
    %v1224 = vshrl.u32 %v1223, 7
    %v1225 = vsub.s32 4, %v1224
    %v1226 = vrot.slane %v782, %v1225
    %v1227 = vmul.f32 %v1185, %v1198
    %v1228 = vmul.f32 %v1185, %v1202
    %v1229 = vmul.f32 %v1185, %v1206
    %v1230 = vmul.f32 %v1185, %v1210
    %v1231 = vmul.f32 %v1185, %v1214
    %v1232 = vmul.f32 %v1185, %v1218
    %v1233 = vmul.f32 %v1185, %v1222
    %v1234 = vmul.f32 %v1185, %v1226
    %v1235 = vmul.f32 %v1189, %v1198
    %v1236 = vmul.f32 %v1189, %v1202
    %v1237 = vmul.f32 %v1189, %v1206
    %v1238 = vmul.f32 %v1189, %v1210
    %v1239 = vmul.f32 %v1189, %v1214
    %v1240 = vmul.f32 %v1189, %v1218
    %v1241 = vmul.f32 %v1189, %v1222
    %v1242 = vmul.f32 %v1189, %v1226
    %v1243 = vmul.f32 %v1193, %v1198
    %v1244 = vmul.f32 %v1193, %v1202
    %v1245 = vmul.f32 %v1193, %v1206
    %v1246 = vmul.f32 %v1193, %v1210
    %v1247 = vmul.f32 %v1193, %v1214
    %v1248 = vmul.f32 %v1193, %v1218
    %v1249 = vmul.f32 %v1193, %v1222
    %v1250 = vmul.f32 %v1193, %v1226
    %v1251 = vadd.f32 %v1159, %v1227
    %v1252 = vadd.f32 %v1160, %v1228
    %v1253 = vadd.f32 %v1161, %v1229
    %v1254 = vadd.f32 %v1162, %v1230
    %v1255 = vadd.f32 %v1163, %v1231
    %v1256 = vadd.f32 %v1164, %v1232
    %v1257 = vadd.f32 %v1165, %v1233
    %v1258 = vadd.f32 %v1166, %v1234
    %v1259 = vadd.f32 %v1167, %v1235
    %v1260 = vadd.f32 %v1168, %v1236
    %v1261 = vadd.f32 %v1169, %v1237
    %v1262 = vadd.f32 %v1170, %v1238
    %v1263 = vadd.f32 %v1171, %v1239
    %v1264 = vadd.f32 %v1172, %v1240
    %v1265 = vadd.f32 %v1173, %v1241
    %v1266 = vadd.f32 %v1174, %v1242
    %v1267 = vadd.f32 %v1175, %v1243
    %v1268 = vadd.f32 %v1176, %v1244
    %v1269 = vadd.f32 %v1177, %v1245
    %v1270 = vadd.f32 %v1178, %v1246
    %v1271 = vadd.f32 %v1179, %v1247
    %v1272 = vadd.f32 %v1180, %v1248
    %v1273 = vadd.f32 %v1181, %v1249
    %v1274 = vadd.f32 %v1182, %v1250
    %1275 = vset.pattern.permute.xlu0 5
    %1276 = vperm.xlu0 %1275, %v791
    %v1277 = vpop.permute.xlu0 %1276
    %1279 = vset.pattern.permute.xlu0 5
    %1280 = vperm.xlu0 %1279, %v792
    %v1281 = vpop.permute.xlu0 %1280
    %1283 = vset.pattern.permute.xlu0 5
    %1284 = vperm.xlu0 %1283, %v793
    %v1285 = vpop.permute.xlu0 %1284
    %v1287 = vlaneseq
    %v1288 = vshrl.u32 %v1287, 7
    %v1289 = vsub.s32 5, %v1288
    %v1290 = vrot.slane %v775, %v1289
    %v1291 = vlaneseq
    %v1292 = vshrl.u32 %v1291, 7
    %v1293 = vsub.s32 5, %v1292
    %v1294 = vrot.slane %v776, %v1293
    %v1295 = vlaneseq
    %v1296 = vshrl.u32 %v1295, 7
    %v1297 = vsub.s32 5, %v1296
    %v1298 = vrot.slane %v777, %v1297
    %v1299 = vlaneseq
    %v1300 = vshrl.u32 %v1299, 7
    %v1301 = vsub.s32 5, %v1300
    %v1302 = vrot.slane %v778, %v1301
    %v1303 = vlaneseq
    %v1304 = vshrl.u32 %v1303, 7
    %v1305 = vsub.s32 5, %v1304
    %v1306 = vrot.slane %v779, %v1305
    %v1307 = vlaneseq
    %v1308 = vshrl.u32 %v1307, 7
    %v1309 = vsub.s32 5, %v1308
    %v1310 = vrot.slane %v780, %v1309
    %v1311 = vlaneseq
    %v1312 = vshrl.u32 %v1311, 7
    %v1313 = vsub.s32 5, %v1312
    %v1314 = vrot.slane %v781, %v1313
    %v1315 = vlaneseq
    %v1316 = vshrl.u32 %v1315, 7
    %v1317 = vsub.s32 5, %v1316
    %v1318 = vrot.slane %v782, %v1317
    %v1319 = vmul.f32 %v1277, %v1290
    %v1320 = vmul.f32 %v1277, %v1294
    %v1321 = vmul.f32 %v1277, %v1298
    %v1322 = vmul.f32 %v1277, %v1302
    %v1323 = vmul.f32 %v1277, %v1306
    %v1324 = vmul.f32 %v1277, %v1310
    %v1325 = vmul.f32 %v1277, %v1314
    %v1326 = vmul.f32 %v1277, %v1318
    %v1327 = vmul.f32 %v1281, %v1290
    %v1328 = vmul.f32 %v1281, %v1294
    %v1329 = vmul.f32 %v1281, %v1298
    %v1330 = vmul.f32 %v1281, %v1302
    %v1331 = vmul.f32 %v1281, %v1306
    %v1332 = vmul.f32 %v1281, %v1310
    %v1333 = vmul.f32 %v1281, %v1314
    %v1334 = vmul.f32 %v1281, %v1318
    %v1335 = vmul.f32 %v1285, %v1290
    %v1336 = vmul.f32 %v1285, %v1294
    %v1337 = vmul.f32 %v1285, %v1298
    %v1338 = vmul.f32 %v1285, %v1302
    %v1339 = vmul.f32 %v1285, %v1306
    %v1340 = vmul.f32 %v1285, %v1310
    %v1341 = vmul.f32 %v1285, %v1314
    %v1342 = vmul.f32 %v1285, %v1318
    %v1343 = vadd.f32 %v1251, %v1319
    %v1344 = vadd.f32 %v1252, %v1320
    %v1345 = vadd.f32 %v1253, %v1321
    %v1346 = vadd.f32 %v1254, %v1322
    %v1347 = vadd.f32 %v1255, %v1323
    %v1348 = vadd.f32 %v1256, %v1324
    %v1349 = vadd.f32 %v1257, %v1325
    %v1350 = vadd.f32 %v1258, %v1326
    %v1351 = vadd.f32 %v1259, %v1327
    %v1352 = vadd.f32 %v1260, %v1328
    %v1353 = vadd.f32 %v1261, %v1329
    %v1354 = vadd.f32 %v1262, %v1330
    %v1355 = vadd.f32 %v1263, %v1331
    %v1356 = vadd.f32 %v1264, %v1332
    %v1357 = vadd.f32 %v1265, %v1333
    %v1358 = vadd.f32 %v1266, %v1334
    %v1359 = vadd.f32 %v1267, %v1335
    %v1360 = vadd.f32 %v1268, %v1336
    %v1361 = vadd.f32 %v1269, %v1337
    %v1362 = vadd.f32 %v1270, %v1338
    %v1363 = vadd.f32 %v1271, %v1339
    %v1364 = vadd.f32 %v1272, %v1340
    %v1365 = vadd.f32 %v1273, %v1341
    %v1366 = vadd.f32 %v1274, %v1342
    %1367 = vset.pattern.permute.xlu0 6
    %1368 = vperm.xlu0 %1367, %v791
    %v1369 = vpop.permute.xlu0 %1368
    %1371 = vset.pattern.permute.xlu0 6
    %1372 = vperm.xlu0 %1371, %v792
    %v1373 = vpop.permute.xlu0 %1372
    %1375 = vset.pattern.permute.xlu0 6
    %1376 = vperm.xlu0 %1375, %v793
    %v1377 = vpop.permute.xlu0 %1376
    %v1379 = vlaneseq
    %v1380 = vshrl.u32 %v1379, 7
    %v1381 = vsub.s32 6, %v1380
    %v1382 = vrot.slane %v775, %v1381
    %v1383 = vlaneseq
    %v1384 = vshrl.u32 %v1383, 7
    %v1385 = vsub.s32 6, %v1384
    %v1386 = vrot.slane %v776, %v1385
    %v1387 = vlaneseq
    %v1388 = vshrl.u32 %v1387, 7
    %v1389 = vsub.s32 6, %v1388
    %v1390 = vrot.slane %v777, %v1389
    %v1391 = vlaneseq
    %v1392 = vshrl.u32 %v1391, 7
    %v1393 = vsub.s32 6, %v1392
    %v1394 = vrot.slane %v778, %v1393
    %v1395 = vlaneseq
    %v1396 = vshrl.u32 %v1395, 7
    %v1397 = vsub.s32 6, %v1396
    %v1398 = vrot.slane %v779, %v1397
    %v1399 = vlaneseq
    %v1400 = vshrl.u32 %v1399, 7
    %v1401 = vsub.s32 6, %v1400
    %v1402 = vrot.slane %v780, %v1401
    %v1403 = vlaneseq
    %v1404 = vshrl.u32 %v1403, 7
    %v1405 = vsub.s32 6, %v1404
    %v1406 = vrot.slane %v781, %v1405
    %v1407 = vlaneseq
    %v1408 = vshrl.u32 %v1407, 7
    %v1409 = vsub.s32 6, %v1408
    %v1410 = vrot.slane %v782, %v1409
    %v1411 = vmul.f32 %v1369, %v1382
    %v1412 = vmul.f32 %v1369, %v1386
    %v1413 = vmul.f32 %v1369, %v1390
    %v1414 = vmul.f32 %v1369, %v1394
    %v1415 = vmul.f32 %v1369, %v1398
    %v1416 = vmul.f32 %v1369, %v1402
    %v1417 = vmul.f32 %v1369, %v1406
    %v1418 = vmul.f32 %v1369, %v1410
    %v1419 = vmul.f32 %v1373, %v1382
    %v1420 = vmul.f32 %v1373, %v1386
    %v1421 = vmul.f32 %v1373, %v1390
    %v1422 = vmul.f32 %v1373, %v1394
    %v1423 = vmul.f32 %v1373, %v1398
    %v1424 = vmul.f32 %v1373, %v1402
    %v1425 = vmul.f32 %v1373, %v1406
    %v1426 = vmul.f32 %v1373, %v1410
    %v1427 = vmul.f32 %v1377, %v1382
    %v1428 = vmul.f32 %v1377, %v1386
    %v1429 = vmul.f32 %v1377, %v1390
    %v1430 = vmul.f32 %v1377, %v1394
    %v1431 = vmul.f32 %v1377, %v1398
    %v1432 = vmul.f32 %v1377, %v1402
    %v1433 = vmul.f32 %v1377, %v1406
    %v1434 = vmul.f32 %v1377, %v1410
    %v1435 = vadd.f32 %v1343, %v1411
    %v1436 = vadd.f32 %v1344, %v1412
    %v1437 = vadd.f32 %v1345, %v1413
    %v1438 = vadd.f32 %v1346, %v1414
    %v1439 = vadd.f32 %v1347, %v1415
    %v1440 = vadd.f32 %v1348, %v1416
    %v1441 = vadd.f32 %v1349, %v1417
    %v1442 = vadd.f32 %v1350, %v1418
    %v1443 = vadd.f32 %v1351, %v1419
    %v1444 = vadd.f32 %v1352, %v1420
    %v1445 = vadd.f32 %v1353, %v1421
    %v1446 = vadd.f32 %v1354, %v1422
    %v1447 = vadd.f32 %v1355, %v1423
    %v1448 = vadd.f32 %v1356, %v1424
    %v1449 = vadd.f32 %v1357, %v1425
    %v1450 = vadd.f32 %v1358, %v1426
    %v1451 = vadd.f32 %v1359, %v1427
    %v1452 = vadd.f32 %v1360, %v1428
    %v1453 = vadd.f32 %v1361, %v1429
    %v1454 = vadd.f32 %v1362, %v1430
    %v1455 = vadd.f32 %v1363, %v1431
    %v1456 = vadd.f32 %v1364, %v1432
    %v1457 = vadd.f32 %v1365, %v1433
    %v1458 = vadd.f32 %v1366, %v1434
    %1459 = vset.pattern.permute.xlu0 7
    %1460 = vperm.xlu0 %1459, %v791
    %v1461 = vpop.permute.xlu0 %1460
    %1463 = vset.pattern.permute.xlu0 7
    %1464 = vperm.xlu0 %1463, %v792
    %v1465 = vpop.permute.xlu0 %1464
    %1467 = vset.pattern.permute.xlu0 7
    %1468 = vperm.xlu0 %1467, %v793
    %v1469 = vpop.permute.xlu0 %1468
    %v1471 = vlaneseq
    %v1472 = vshrl.u32 %v1471, 7
    %v1473 = vsub.s32 7, %v1472
    %v1474 = vrot.slane %v775, %v1473
    %v1475 = vlaneseq
    %v1476 = vshrl.u32 %v1475, 7
    %v1477 = vsub.s32 7, %v1476
    %v1478 = vrot.slane %v776, %v1477
    %v1479 = vlaneseq
    %v1480 = vshrl.u32 %v1479, 7
    %v1481 = vsub.s32 7, %v1480
    %v1482 = vrot.slane %v777, %v1481
    %v1483 = vlaneseq
    %v1484 = vshrl.u32 %v1483, 7
    %v1485 = vsub.s32 7, %v1484
    %v1486 = vrot.slane %v778, %v1485
    %v1487 = vlaneseq
    %v1488 = vshrl.u32 %v1487, 7
    %v1489 = vsub.s32 7, %v1488
    %v1490 = vrot.slane %v779, %v1489
    %v1491 = vlaneseq
    %v1492 = vshrl.u32 %v1491, 7
    %v1493 = vsub.s32 7, %v1492
    %v1494 = vrot.slane %v780, %v1493
    %v1495 = vlaneseq
    %v1496 = vshrl.u32 %v1495, 7
    %v1497 = vsub.s32 7, %v1496
    %v1498 = vrot.slane %v781, %v1497
    %v1499 = vlaneseq
    %v1500 = vshrl.u32 %v1499, 7
    %v1501 = vsub.s32 7, %v1500
    %v1502 = vrot.slane %v782, %v1501
    %v1503 = vmul.f32 %v1461, %v1474
    %v1504 = vmul.f32 %v1461, %v1478
    %v1505 = vmul.f32 %v1461, %v1482
    %v1506 = vmul.f32 %v1461, %v1486
    %v1507 = vmul.f32 %v1461, %v1490
    %v1508 = vmul.f32 %v1461, %v1494
    %v1509 = vmul.f32 %v1461, %v1498
    %v1510 = vmul.f32 %v1461, %v1502
    %v1511 = vmul.f32 %v1465, %v1474
    %v1512 = vmul.f32 %v1465, %v1478
    %v1513 = vmul.f32 %v1465, %v1482
    %v1514 = vmul.f32 %v1465, %v1486
    %v1515 = vmul.f32 %v1465, %v1490
    %v1516 = vmul.f32 %v1465, %v1494
    %v1517 = vmul.f32 %v1465, %v1498
    %v1518 = vmul.f32 %v1465, %v1502
    %v1519 = vmul.f32 %v1469, %v1474
    %v1520 = vmul.f32 %v1469, %v1478
    %v1521 = vmul.f32 %v1469, %v1482
    %v1522 = vmul.f32 %v1469, %v1486
    %v1523 = vmul.f32 %v1469, %v1490
    %v1524 = vmul.f32 %v1469, %v1494
    %v1525 = vmul.f32 %v1469, %v1498
    %v1526 = vmul.f32 %v1469, %v1502
    %v1527 = vadd.f32 %v1435, %v1503
    %v1528 = vadd.f32 %v1436, %v1504
    %v1529 = vadd.f32 %v1437, %v1505
    %v1530 = vadd.f32 %v1438, %v1506
    %v1531 = vadd.f32 %v1439, %v1507
    %v1532 = vadd.f32 %v1440, %v1508
    %v1533 = vadd.f32 %v1441, %v1509
    %v1534 = vadd.f32 %v1442, %v1510
    %v1535 = vadd.f32 %v1443, %v1511
    %v1536 = vadd.f32 %v1444, %v1512
    %v1537 = vadd.f32 %v1445, %v1513
    %v1538 = vadd.f32 %v1446, %v1514
    %v1539 = vadd.f32 %v1447, %v1515
    %v1540 = vadd.f32 %v1448, %v1516
    %v1541 = vadd.f32 %v1449, %v1517
    %v1542 = vadd.f32 %v1450, %v1518
    %v1543 = vadd.f32 %v1451, %v1519
    %v1544 = vadd.f32 %v1452, %v1520
    %v1545 = vadd.f32 %v1453, %v1521
    %v1546 = vadd.f32 %v1454, %v1522
    %v1547 = vadd.f32 %v1455, %v1523
    %v1548 = vadd.f32 %v1456, %v1524
    %v1549 = vadd.f32 %v1457, %v1525
    %v1550 = vadd.f32 %v1458, %v1526
    %1551 = vset.pattern.permute.xlu0 8
    %1552 = vperm.xlu0 %1551, %v791
    %v1553 = vpop.permute.xlu0 %1552
    %1555 = vset.pattern.permute.xlu0 8
    %1556 = vperm.xlu0 %1555, %v792
    %v1557 = vpop.permute.xlu0 %1556
    %1559 = vset.pattern.permute.xlu0 8
    %1560 = vperm.xlu0 %1559, %v793
    %v1561 = vpop.permute.xlu0 %1560
    %v1563 = vlaneseq
    %v1564 = vshrl.u32 %v1563, 7
    %v1565 = vsub.s32 0, %v1564
    %v1566 = vrot.slane %v783, %v1565
    %v1567 = vlaneseq
    %v1568 = vshrl.u32 %v1567, 7
    %v1569 = vsub.s32 0, %v1568
    %v1570 = vrot.slane %v784, %v1569
    %v1571 = vlaneseq
    %v1572 = vshrl.u32 %v1571, 7
    %v1573 = vsub.s32 0, %v1572
    %v1574 = vrot.slane %v785, %v1573
    %v1575 = vlaneseq
    %v1576 = vshrl.u32 %v1575, 7
    %v1577 = vsub.s32 0, %v1576
    %v1578 = vrot.slane %v786, %v1577
    %v1579 = vlaneseq
    %v1580 = vshrl.u32 %v1579, 7
    %v1581 = vsub.s32 0, %v1580
    %v1582 = vrot.slane %v787, %v1581
    %v1583 = vlaneseq
    %v1584 = vshrl.u32 %v1583, 7
    %v1585 = vsub.s32 0, %v1584
    %v1586 = vrot.slane %v788, %v1585
    %v1587 = vlaneseq
    %v1588 = vshrl.u32 %v1587, 7
    %v1589 = vsub.s32 0, %v1588
    %v1590 = vrot.slane %v789, %v1589
    %v1591 = vlaneseq
    %v1592 = vshrl.u32 %v1591, 7
    %v1593 = vsub.s32 0, %v1592
    %v1594 = vrot.slane %v790, %v1593
    %v1595 = vmul.f32 %v1553, %v1566
    %v1596 = vmul.f32 %v1553, %v1570
    %v1597 = vmul.f32 %v1553, %v1574
    %v1598 = vmul.f32 %v1553, %v1578
    %v1599 = vmul.f32 %v1553, %v1582
    %v1600 = vmul.f32 %v1553, %v1586
    %v1601 = vmul.f32 %v1553, %v1590
    %v1602 = vmul.f32 %v1553, %v1594
    %v1603 = vmul.f32 %v1557, %v1566
    %v1604 = vmul.f32 %v1557, %v1570
    %v1605 = vmul.f32 %v1557, %v1574
    %v1606 = vmul.f32 %v1557, %v1578
    %v1607 = vmul.f32 %v1557, %v1582
    %v1608 = vmul.f32 %v1557, %v1586
    %v1609 = vmul.f32 %v1557, %v1590
    %v1610 = vmul.f32 %v1557, %v1594
    %v1611 = vmul.f32 %v1561, %v1566
    %v1612 = vmul.f32 %v1561, %v1570
    %v1613 = vmul.f32 %v1561, %v1574
    %v1614 = vmul.f32 %v1561, %v1578
    %v1615 = vmul.f32 %v1561, %v1582
    %v1616 = vmul.f32 %v1561, %v1586
    %v1617 = vmul.f32 %v1561, %v1590
    %v1618 = vmul.f32 %v1561, %v1594
    %v1619 = vadd.f32 %v1527, %v1595
    %v1620 = vadd.f32 %v1528, %v1596
    %v1621 = vadd.f32 %v1529, %v1597
    %v1622 = vadd.f32 %v1530, %v1598
    %v1623 = vadd.f32 %v1531, %v1599
    %v1624 = vadd.f32 %v1532, %v1600
    %v1625 = vadd.f32 %v1533, %v1601
    %v1626 = vadd.f32 %v1534, %v1602
    %v1627 = vadd.f32 %v1535, %v1603
    %v1628 = vadd.f32 %v1536, %v1604
    %v1629 = vadd.f32 %v1537, %v1605
    %v1630 = vadd.f32 %v1538, %v1606
    %v1631 = vadd.f32 %v1539, %v1607
    %v1632 = vadd.f32 %v1540, %v1608
    %v1633 = vadd.f32 %v1541, %v1609
    %v1634 = vadd.f32 %v1542, %v1610
    %v1635 = vadd.f32 %v1543, %v1611
    %v1636 = vadd.f32 %v1544, %v1612
    %v1637 = vadd.f32 %v1545, %v1613
    %v1638 = vadd.f32 %v1546, %v1614
    %v1639 = vadd.f32 %v1547, %v1615
    %v1640 = vadd.f32 %v1548, %v1616
    %v1641 = vadd.f32 %v1549, %v1617
    %v1642 = vadd.f32 %v1550, %v1618
    %1643 = vset.pattern.permute.xlu0 9
    %1644 = vperm.xlu0 %1643, %v791
    %v1645 = vpop.permute.xlu0 %1644
    %1647 = vset.pattern.permute.xlu0 9
    %1648 = vperm.xlu0 %1647, %v792
    %v1649 = vpop.permute.xlu0 %1648
    %1651 = vset.pattern.permute.xlu0 9
    %1652 = vperm.xlu0 %1651, %v793
    %v1653 = vpop.permute.xlu0 %1652
    %v1655 = vlaneseq
    %v1656 = vshrl.u32 %v1655, 7
    %v1657 = vsub.s32 1, %v1656
    %v1658 = vrot.slane %v783, %v1657
    %v1659 = vlaneseq
    %v1660 = vshrl.u32 %v1659, 7
    %v1661 = vsub.s32 1, %v1660
    %v1662 = vrot.slane %v784, %v1661
    %v1663 = vlaneseq
    %v1664 = vshrl.u32 %v1663, 7
    %v1665 = vsub.s32 1, %v1664
    %v1666 = vrot.slane %v785, %v1665
    %v1667 = vlaneseq
    %v1668 = vshrl.u32 %v1667, 7
    %v1669 = vsub.s32 1, %v1668
    %v1670 = vrot.slane %v786, %v1669
    %v1671 = vlaneseq
    %v1672 = vshrl.u32 %v1671, 7
    %v1673 = vsub.s32 1, %v1672
    %v1674 = vrot.slane %v787, %v1673
    %v1675 = vlaneseq
    %v1676 = vshrl.u32 %v1675, 7
    %v1677 = vsub.s32 1, %v1676
    %v1678 = vrot.slane %v788, %v1677
    %v1679 = vlaneseq
    %v1680 = vshrl.u32 %v1679, 7
    %v1681 = vsub.s32 1, %v1680
    %v1682 = vrot.slane %v789, %v1681
    %v1683 = vlaneseq
    %v1684 = vshrl.u32 %v1683, 7
    %v1685 = vsub.s32 1, %v1684
    %v1686 = vrot.slane %v790, %v1685
    %v1687 = vmul.f32 %v1645, %v1658
    %v1688 = vmul.f32 %v1645, %v1662
    %v1689 = vmul.f32 %v1645, %v1666
    %v1690 = vmul.f32 %v1645, %v1670
    %v1691 = vmul.f32 %v1645, %v1674
    %v1692 = vmul.f32 %v1645, %v1678
    %v1693 = vmul.f32 %v1645, %v1682
    %v1694 = vmul.f32 %v1645, %v1686
    %v1695 = vmul.f32 %v1649, %v1658
    %v1696 = vmul.f32 %v1649, %v1662
    %v1697 = vmul.f32 %v1649, %v1666
    %v1698 = vmul.f32 %v1649, %v1670
    %v1699 = vmul.f32 %v1649, %v1674
    %v1700 = vmul.f32 %v1649, %v1678
    %v1701 = vmul.f32 %v1649, %v1682
    %v1702 = vmul.f32 %v1649, %v1686
    %v1703 = vmul.f32 %v1653, %v1658
    %v1704 = vmul.f32 %v1653, %v1662
    %v1705 = vmul.f32 %v1653, %v1666
    %v1706 = vmul.f32 %v1653, %v1670
    %v1707 = vmul.f32 %v1653, %v1674
    %v1708 = vmul.f32 %v1653, %v1678
    %v1709 = vmul.f32 %v1653, %v1682
    %v1710 = vmul.f32 %v1653, %v1686
    %v1711 = vadd.f32 %v1619, %v1687
    %v1712 = vadd.f32 %v1620, %v1688
    %v1713 = vadd.f32 %v1621, %v1689
    %v1714 = vadd.f32 %v1622, %v1690
    %v1715 = vadd.f32 %v1623, %v1691
    %v1716 = vadd.f32 %v1624, %v1692
    %v1717 = vadd.f32 %v1625, %v1693
    %v1718 = vadd.f32 %v1626, %v1694
    %v1719 = vadd.f32 %v1627, %v1695
    %v1720 = vadd.f32 %v1628, %v1696
    %v1721 = vadd.f32 %v1629, %v1697
    %v1722 = vadd.f32 %v1630, %v1698
    %v1723 = vadd.f32 %v1631, %v1699
    %v1724 = vadd.f32 %v1632, %v1700
    %v1725 = vadd.f32 %v1633, %v1701
    %v1726 = vadd.f32 %v1634, %v1702
    %v1727 = vadd.f32 %v1635, %v1703
    %v1728 = vadd.f32 %v1636, %v1704
    %v1729 = vadd.f32 %v1637, %v1705
    %v1730 = vadd.f32 %v1638, %v1706
    %v1731 = vadd.f32 %v1639, %v1707
    %v1732 = vadd.f32 %v1640, %v1708
    %v1733 = vadd.f32 %v1641, %v1709
    %v1734 = vadd.f32 %v1642, %v1710
    %1735 = vset.pattern.permute.xlu0 10
    %1736 = vperm.xlu0 %1735, %v791
    %v1737 = vpop.permute.xlu0 %1736
    %1739 = vset.pattern.permute.xlu0 10
    %1740 = vperm.xlu0 %1739, %v792
    %v1741 = vpop.permute.xlu0 %1740
    %1743 = vset.pattern.permute.xlu0 10
    %1744 = vperm.xlu0 %1743, %v793
    %v1745 = vpop.permute.xlu0 %1744
    %v1747 = vlaneseq
    %v1748 = vshrl.u32 %v1747, 7
    %v1749 = vsub.s32 2, %v1748
    %v1750 = vrot.slane %v783, %v1749
    %v1751 = vlaneseq
    %v1752 = vshrl.u32 %v1751, 7
    %v1753 = vsub.s32 2, %v1752
    %v1754 = vrot.slane %v784, %v1753
    %v1755 = vlaneseq
    %v1756 = vshrl.u32 %v1755, 7
    %v1757 = vsub.s32 2, %v1756
    %v1758 = vrot.slane %v785, %v1757
    %v1759 = vlaneseq
    %v1760 = vshrl.u32 %v1759, 7
    %v1761 = vsub.s32 2, %v1760
    %v1762 = vrot.slane %v786, %v1761
    %v1763 = vlaneseq
    %v1764 = vshrl.u32 %v1763, 7
    %v1765 = vsub.s32 2, %v1764
    %v1766 = vrot.slane %v787, %v1765
    %v1767 = vlaneseq
    %v1768 = vshrl.u32 %v1767, 7
    %v1769 = vsub.s32 2, %v1768
    %v1770 = vrot.slane %v788, %v1769
    %v1771 = vlaneseq
    %v1772 = vshrl.u32 %v1771, 7
    %v1773 = vsub.s32 2, %v1772
    %v1774 = vrot.slane %v789, %v1773
    %v1775 = vlaneseq
    %v1776 = vshrl.u32 %v1775, 7
    %v1777 = vsub.s32 2, %v1776
    %v1778 = vrot.slane %v790, %v1777
    %v1779 = vmul.f32 %v1737, %v1750
    %v1780 = vmul.f32 %v1737, %v1754
    %v1781 = vmul.f32 %v1737, %v1758
    %v1782 = vmul.f32 %v1737, %v1762
    %v1783 = vmul.f32 %v1737, %v1766
    %v1784 = vmul.f32 %v1737, %v1770
    %v1785 = vmul.f32 %v1737, %v1774
    %v1786 = vmul.f32 %v1737, %v1778
    %v1787 = vmul.f32 %v1741, %v1750
    %v1788 = vmul.f32 %v1741, %v1754
    %v1789 = vmul.f32 %v1741, %v1758
    %v1790 = vmul.f32 %v1741, %v1762
    %v1791 = vmul.f32 %v1741, %v1766
    %v1792 = vmul.f32 %v1741, %v1770
    %v1793 = vmul.f32 %v1741, %v1774
    %v1794 = vmul.f32 %v1741, %v1778
    %v1795 = vmul.f32 %v1745, %v1750
    %v1796 = vmul.f32 %v1745, %v1754
    %v1797 = vmul.f32 %v1745, %v1758
    %v1798 = vmul.f32 %v1745, %v1762
    %v1799 = vmul.f32 %v1745, %v1766
    %v1800 = vmul.f32 %v1745, %v1770
    %v1801 = vmul.f32 %v1745, %v1774
    %v1802 = vmul.f32 %v1745, %v1778
    %v1803 = vadd.f32 %v1711, %v1779
    %v1804 = vadd.f32 %v1712, %v1780
    %v1805 = vadd.f32 %v1713, %v1781
    %v1806 = vadd.f32 %v1714, %v1782
    %v1807 = vadd.f32 %v1715, %v1783
    %v1808 = vadd.f32 %v1716, %v1784
    %v1809 = vadd.f32 %v1717, %v1785
    %v1810 = vadd.f32 %v1718, %v1786
    %v1811 = vadd.f32 %v1719, %v1787
    %v1812 = vadd.f32 %v1720, %v1788
    %v1813 = vadd.f32 %v1721, %v1789
    %v1814 = vadd.f32 %v1722, %v1790
    %v1815 = vadd.f32 %v1723, %v1791
    %v1816 = vadd.f32 %v1724, %v1792
    %v1817 = vadd.f32 %v1725, %v1793
    %v1818 = vadd.f32 %v1726, %v1794
    %v1819 = vadd.f32 %v1727, %v1795
    %v1820 = vadd.f32 %v1728, %v1796
    %v1821 = vadd.f32 %v1729, %v1797
    %v1822 = vadd.f32 %v1730, %v1798
    %v1823 = vadd.f32 %v1731, %v1799
    %v1824 = vadd.f32 %v1732, %v1800
    %v1825 = vadd.f32 %v1733, %v1801
    %v1826 = vadd.f32 %v1734, %v1802
    %1827 = vset.pattern.permute.xlu0 11
    %1828 = vperm.xlu0 %1827, %v791
    %v1829 = vpop.permute.xlu0 %1828
    %1831 = vset.pattern.permute.xlu0 11
    %1832 = vperm.xlu0 %1831, %v792
    %v1833 = vpop.permute.xlu0 %1832
    %1835 = vset.pattern.permute.xlu0 11
    %1836 = vperm.xlu0 %1835, %v793
    %v1837 = vpop.permute.xlu0 %1836
    %v1839 = vlaneseq
    %v1840 = vshrl.u32 %v1839, 7
    %v1841 = vsub.s32 3, %v1840
    %v1842 = vrot.slane %v783, %v1841
    %v1843 = vlaneseq
    %v1844 = vshrl.u32 %v1843, 7
    %v1845 = vsub.s32 3, %v1844
    %v1846 = vrot.slane %v784, %v1845
    %v1847 = vlaneseq
    %v1848 = vshrl.u32 %v1847, 7
    %v1849 = vsub.s32 3, %v1848
    %v1850 = vrot.slane %v785, %v1849
    %v1851 = vlaneseq
    %v1852 = vshrl.u32 %v1851, 7
    %v1853 = vsub.s32 3, %v1852
    %v1854 = vrot.slane %v786, %v1853
    %v1855 = vlaneseq
    %v1856 = vshrl.u32 %v1855, 7
    %v1857 = vsub.s32 3, %v1856
    %v1858 = vrot.slane %v787, %v1857
    %v1859 = vlaneseq
    %v1860 = vshrl.u32 %v1859, 7
    %v1861 = vsub.s32 3, %v1860
    %v1862 = vrot.slane %v788, %v1861
    %v1863 = vlaneseq
    %v1864 = vshrl.u32 %v1863, 7
    %v1865 = vsub.s32 3, %v1864
    %v1866 = vrot.slane %v789, %v1865
    %v1867 = vlaneseq
    %v1868 = vshrl.u32 %v1867, 7
    %v1869 = vsub.s32 3, %v1868
    %v1870 = vrot.slane %v790, %v1869
    %v1871 = vmul.f32 %v1829, %v1842
    %v1872 = vmul.f32 %v1829, %v1846
    %v1873 = vmul.f32 %v1829, %v1850
    %v1874 = vmul.f32 %v1829, %v1854
    %v1875 = vmul.f32 %v1829, %v1858
    %v1876 = vmul.f32 %v1829, %v1862
    %v1877 = vmul.f32 %v1829, %v1866
    %v1878 = vmul.f32 %v1829, %v1870
    %v1879 = vmul.f32 %v1833, %v1842
    %v1880 = vmul.f32 %v1833, %v1846
    %v1881 = vmul.f32 %v1833, %v1850
    %v1882 = vmul.f32 %v1833, %v1854
    %v1883 = vmul.f32 %v1833, %v1858
    %v1884 = vmul.f32 %v1833, %v1862
    %v1885 = vmul.f32 %v1833, %v1866
    %v1886 = vmul.f32 %v1833, %v1870
    %v1887 = vmul.f32 %v1837, %v1842
    %v1888 = vmul.f32 %v1837, %v1846
    %v1889 = vmul.f32 %v1837, %v1850
    %v1890 = vmul.f32 %v1837, %v1854
    %v1891 = vmul.f32 %v1837, %v1858
    %v1892 = vmul.f32 %v1837, %v1862
    %v1893 = vmul.f32 %v1837, %v1866
    %v1894 = vmul.f32 %v1837, %v1870
    %v1895 = vadd.f32 %v1803, %v1871
    %v1896 = vadd.f32 %v1804, %v1872
    %v1897 = vadd.f32 %v1805, %v1873
    %v1898 = vadd.f32 %v1806, %v1874
    %v1899 = vadd.f32 %v1807, %v1875
    %v1900 = vadd.f32 %v1808, %v1876
    %v1901 = vadd.f32 %v1809, %v1877
    %v1902 = vadd.f32 %v1810, %v1878
    %v1903 = vadd.f32 %v1811, %v1879
    %v1904 = vadd.f32 %v1812, %v1880
    %v1905 = vadd.f32 %v1813, %v1881
    %v1906 = vadd.f32 %v1814, %v1882
    %v1907 = vadd.f32 %v1815, %v1883
    %v1908 = vadd.f32 %v1816, %v1884
    %v1909 = vadd.f32 %v1817, %v1885
    %v1910 = vadd.f32 %v1818, %v1886
    %v1911 = vadd.f32 %v1819, %v1887
    %v1912 = vadd.f32 %v1820, %v1888
    %v1913 = vadd.f32 %v1821, %v1889
    %v1914 = vadd.f32 %v1822, %v1890
    %v1915 = vadd.f32 %v1823, %v1891
    %v1916 = vadd.f32 %v1824, %v1892
    %v1917 = vadd.f32 %v1825, %v1893
    %v1918 = vadd.f32 %v1826, %v1894
    %v1919 = vmax.f32 %v1895, 0.0
    %v1920 = vmax.f32 %v1896, 0.0
    %v1921 = vmax.f32 %v1897, 0.0
    %v1922 = vmax.f32 %v1898, 0.0
    %v1923 = vmax.f32 %v1899, 0.0
    %v1924 = vmax.f32 %v1900, 0.0
    %v1925 = vmax.f32 %v1901, 0.0
    %v1926 = vmax.f32 %v1902, 0.0
    %v1927 = vmax.f32 %v1903, 0.0
    %v1928 = vmax.f32 %v1904, 0.0
    %v1929 = vmax.f32 %v1905, 0.0
    %v1930 = vmax.f32 %v1906, 0.0
    %v1931 = vmax.f32 %v1907, 0.0
    %v1932 = vmax.f32 %v1908, 0.0
    %v1933 = vmax.f32 %v1909, 0.0
    %v1934 = vmax.f32 %v1910, 0.0
    %v1935 = vmax.f32 %v1911, 0.0
    %v1936 = vmax.f32 %v1912, 0.0
    %v1937 = vmax.f32 %v1913, 0.0
    %v1938 = vmax.f32 %v1914, 0.0
    %v1939 = vmax.f32 %v1915, 0.0
    %v1940 = vmax.f32 %v1916, 0.0
    %v1941 = vmax.f32 %v1917, 0.0
    %v1942 = vmax.f32 %v1918, 0.0
    %v1943 = vcombine.high %v27, %v27
    %v1944 = vcombine.high %v28, %v28
    %v1945 = vcombine.high %v29, %v29
    %v1946 = vcombine.high %v30, %v30
    %1951 = vst [vmem:[#allocation2] sm:$0x7] %v27
    %1952 = vst [vmem:[#allocation2 + $0x8] sm:$0x7] %v1943
    %1953 = vst [vmem:[#allocation2 + $0x10] sm:$0x7] %v28
    %1954 = vst [vmem:[#allocation2 + $0x18] sm:$0x7] %v1944
    %1955 = vst [vmem:[#allocation2 + $0x20] sm:$0x7] %v29
    %1956 = vst [vmem:[#allocation2 + $0x28] sm:$0x7] %v1945
    %1957 = vst [vmem:[#allocation2 + $0x30] sm:$0x7] %v30
    %1958 = vst [vmem:[#allocation2 + $0x38] sm:$0x7] %v1946
    %vm1983 = vcmask 1042432
    %v1984 = vrot.slane %v1919, 5
    %v1985 = vrot.slane %v1920, 5
    %v1986 = vrot.slane %v1921, 5
    %v1987 = vrot.slane %v1922, 5
    %v1988 = vrot.slane %v1923, 5
    %v1989 = vrot.slane %v1924, 5
    %v1990 = vrot.slane %v1925, 5
    %v1991 = vrot.slane %v1926, 5
    %v1992 = vrot.slane %v1927, 5
    %v1993 = vsel %vm1983, %v1984, %v1992
    %v1994 = vrot.slane %v1928, 5
    %v1995 = vsel %vm1983, %v1985, %v1994
    %v1996 = vrot.slane %v1929, 5
    %v1997 = vsel %vm1983, %v1986, %v1996
    %v1998 = vrot.slane %v1930, 5
    %v1999 = vsel %vm1983, %v1987, %v1998
    %v2000 = vrot.slane %v1931, 5
    %v2001 = vsel %vm1983, %v1988, %v2000
    %v2002 = vrot.slane %v1932, 5
    %v2003 = vsel %vm1983, %v1989, %v2002
    %v2004 = vrot.slane %v1933, 5
    %v2005 = vsel %vm1983, %v1990, %v2004
    %v2006 = vrot.slane %v1934, 5
    %v2007 = vsel %vm1983, %v1991, %v2006
    %v2008 = vrot.slane %v1935, 5
    %v2009 = vsel %vm1983, %v1992, %v2008
    %v2010 = vrot.slane %v1936, 5
    %v2011 = vsel %vm1983, %v1994, %v2010
    %v2012 = vrot.slane %v1937, 5
    %v2013 = vsel %vm1983, %v1996, %v2012
    %v2014 = vrot.slane %v1938, 5
    %v2015 = vsel %vm1983, %v1998, %v2014
    %v2016 = vrot.slane %v1939, 5
    %v2017 = vsel %vm1983, %v2000, %v2016
    %v2018 = vrot.slane %v1940, 5
    %v2019 = vsel %vm1983, %v2002, %v2018
    %v2020 = vrot.slane %v1941, 5
    %v2021 = vsel %vm1983, %v2004, %v2020
    %v2022 = vrot.slane %v1942, 5
    %v2023 = vsel %vm1983, %v2006, %v2022
    %2056 = vst [vmem:[#allocation2] sm:$0xf8] %v1984
    %2057 = vst [vmem:[#allocation2 + $0x8] sm:$0xf8] %v1985
    %2058 = vst [vmem:[#allocation2 + $0x10] sm:$0xf8] %v1986
    %2059 = vst [vmem:[#allocation2 + $0x18] sm:$0xf8] %v1987
    %2060 = vst [vmem:[#allocation2 + $0x20] sm:$0xf8] %v1988
    %2061 = vst [vmem:[#allocation2 + $0x28] sm:$0xf8] %v1989
    %2062 = vst [vmem:[#allocation2 + $0x30] sm:$0xf8] %v1990
    %2063 = vst [vmem:[#allocation2 + $0x38] sm:$0xf8] %v1991
    %2064 = vst [vmem:[#allocation2 + $0x40] sm:$0xff] %v1993
    %2065 = vst [vmem:[#allocation2 + $0x48] sm:$0xff] %v1995
    %2066 = vst [vmem:[#allocation2 + $0x50] sm:$0xff] %v1997
    %2067 = vst [vmem:[#allocation2 + $0x58] sm:$0xff] %v1999
    %2068 = vst [vmem:[#allocation2 + $0x60] sm:$0xff] %v2001
    %2069 = vst [vmem:[#allocation2 + $0x68] sm:$0xff] %v2003
    %2070 = vst [vmem:[#allocation2 + $0x70] sm:$0xff] %v2005
    %2071 = vst [vmem:[#allocation2 + $0x78] sm:$0xff] %v2007
    %2072 = vst [vmem:[#allocation2 + $0x80] sm:$0xff] %v2009
    %2073 = vst [vmem:[#allocation2 + $0x88] sm:$0xff] %v2011
    %2074 = vst [vmem:[#allocation2 + $0x90] sm:$0xff] %v2013
    %2075 = vst [vmem:[#allocation2 + $0x98] sm:$0xff] %v2015
    %2076 = vst [vmem:[#allocation2 + $0xa0] sm:$0xff] %v2017
    %2077 = vst [vmem:[#allocation2 + $0xa8] sm:$0xff] %v2019
    %2078 = vst [vmem:[#allocation2 + $0xb0] sm:$0xff] %v2021
    %2079 = vst [vmem:[#allocation2 + $0xb8] sm:$0xff] %v2023
    %2080 = vst [vmem:[#allocation2 + $0xc0] sm:$0x7] %v2008
    %2081 = vst [vmem:[#allocation2 + $0xc8] sm:$0x7] %v2010
    %2082 = vst [vmem:[#allocation2 + $0xd0] sm:$0x7] %v2012
    %2083 = vst [vmem:[#allocation2 + $0xd8] sm:$0x7] %v2014
    %2084 = vst [vmem:[#allocation2 + $0xe0] sm:$0x7] %v2016
    %2085 = vst [vmem:[#allocation2 + $0xe8] sm:$0x7] %v2018
    %2086 = vst [vmem:[#allocation2 + $0xf0] sm:$0x7] %v2020
    %2087 = vst [vmem:[#allocation2 + $0xf8] sm:$0x7] %v2022
    // Predicated region
    $region30: #{tpu_custom_call.1} parent=1 // pred_check
      _
    $region31: #{tpu_custom_call.1} parent=1 // pred_check_branch
      %2089 = sbr.rel (0) target = $region33
    $region32: #{tpu_custom_call.1} parent=1 // pred_region
      %s2091 = ssub.s32 4096, 4096
      %2092 = vsyncadd [#allocation3], %s2091
      %s2093 = sshll.u32 [#allocation2], 4
      %s2094 = int_to_ptr.vmem [resolvable:$true] %s2093
      %2099 = dma.vmem_to_hbm [thread:$0]  %s2094, 4096, %s7, [#allocation3], 1024, 1024, 64
    $region33: #{tpu_custom_call.1} parent=1 // pred_fallthru
      _
    // Predicated region
    $region34: #{tpu_custom_call.1} parent=1 // pred_check
      _
    $region35: #{tpu_custom_call.1} parent=1 // pred_check_branch
      %2101 = sbr.rel (0) target = $region37
    $region36: #{tpu_custom_call.1} parent=1 // pred_region
      %2102 = dma.done [#allocation3], 4096
    $region37: #{tpu_custom_call.1} parent=1 // pred_fallthru
      _
    %2103 = vsyncpa [#allocation3], 1

</llo_original>
